<compile_context>
chip_gen: v6e
topology: v6e:2x2x1
jax: 0.10.0
libtpu: 0.0.40
codegen_flags: <defaults>
</compile_context>

<pallas_src>
import jax
import jax.numpy as jnp
from jax.experimental import pallas as pl
from jax.experimental.pallas import tpu as pltpu


def _round_up(x, m):
    return ((x + m - 1) // m) * m


def _cdiv(a, b):
    return -(-a // b)


# ----------------------------------------------------------------------------
# Kernel
# ----------------------------------------------------------------------------
def _uno_decoder_kernel(
    pos_ref, feat_ref,        # (tile, pos_dim), (tile, feat_dim)  token blocks
    wp_ref, bp_ref,           # (pos_dim, H) bf16,   (1, H) f32
    wf_ref, bf_ref,           # (feat_dim, H) bf16,  (1, H) f32
    wres_ref, bres_ref,       # (3, H, H) bf16,      (3, 1, H) f32
    wo_ref, bo_ref,           # (H, num_cls) bf16,   (1, num_cls) f32
    out_ref,                  # (tile, num_cls)
):
    f32 = jnp.float32
    cdt = wp_ref.dtype        # MXU compute dtype (bf16); f32 accumulation below

    pos = pos_ref[...].astype(cdt)    # no-op if inputs are already bf16
    feat = feat_ref[...].astype(cdt)

    # Projections (K = 8 / 16, N = 32 — tiny; kernel is memory bound anyway).
    feat_proj = jnp.dot(feat, wf_ref[...], preferred_element_type=f32) + bf_ref[...]
    pos_proj = jnp.dot(pos, wp_ref[...], preferred_element_type=f32) + bp_ref[...]
    x = pos_proj + feat_proj

    # res_block_i(v) = relu(Linear_i(v))   (duplicate-key quirk, see NOTE)
    def res_block(v, k):
        y = jnp.dot(v.astype(cdt), wres_ref[k], preferred_element_type=f32)
        return jnp.maximum(y + bres_ref[k], 0.0)

    out1 = jnp.maximum(x + res_block(x, 0), 0.0)
    out2 = jnp.maximum(out1 + res_block(out1 + feat_proj, 1), 0.0)
    out3 = jnp.maximum(out2 + res_block(out2 + feat_proj, 2), 0.0)

    # final linear + softmax(dim=-1); exact normalization (reciprocal is cheap)
    logits = jnp.dot(out3.astype(cdt), wo_ref[...], preferred_element_type=f32) + bo_ref[...]
    m = jnp.max(logits, axis=-1, keepdims=True)
    e = jnp.exp(logits - m)
    inv = pl.reciprocal(jnp.sum(e, axis=-1, keepdims=True))   # exact (approx=False)
    out_ref[...] = (e * inv).astype(out_ref.dtype)


# ----------------------------------------------------------------------------
# Tiling / wrapper
# ----------------------------------------------------------------------------
def _choose_tile(M, tile_m, min_grid_steps):
    """Pick a token tile (multiple of 32, bf16-safe) and grid length."""
    MIN_ROWS = 128                                   # don't split below this/step
    tile = _round_up(max(1, min(int(tile_m), M)), 32)
    if min_grid_steps > 1 and M >= min_grid_steps * MIN_ROWS:
        # Guarantee >= min_grid_steps steps: >=2 per TensorCore on v7x megacore
        # and DMA/compute overlap within each core.
        cap = max(_round_up(_cdiv(M, min_grid_steps), 32), MIN_ROWS)
        tile = min(tile, cap)
    if tile >= M:
        return M, 1                                  # single block == full dim
    return tile, _cdiv(M, tile)                      # ragged last block is masked


def _vmem_bytes_estimate(tile, pos_dim, feat_dim, hidden, num_cls, in_itemsize, bufs):
    """Conservative byte estimate of live VMEM for one grid step."""
    lane = lambda d: _round_up(max(d, 1), 128)
    io_in = bufs * tile * (lane(pos_dim) + lane(feat_dim)) * in_itemsize
    io_out = 2 * tile * lane(num_cls) * 4
    acts = 10 * tile * lane(hidden) * 4
    return io_in + io_out + acts


def uno_decoder_forward(pos, feat, packed, *, tile_m=2048, min_grid_steps=4,
                        input_buffers=3, out_dtype=jnp.float32):
    """pos: (B, N, pos_dim), feat: (B, N, feat_dim) -> probs (B, N, num_cls).

    tile_m / min_grid_steps / input_buffers are sweepable perf knobs:
      v7x : tile_m<=2048, min_grid_steps=4 (two TensorCores)
      v6e/v5e: tile_m 2048-4096, min_grid_steps=2 is fine (single TC, 128MiB VMEM)
    """
    B, N, pos_dim = pos.shape
    _, _, feat_dim = feat.shape
    hidden = packed["wres"].shape[-1]
    num_cls = packed["wo"].shape[-1]
    M = B * N

    # Leading-dim collapse only: layout-preserving, no HBM copy.
    pos2d = pos.reshape(M, pos_dim)
    feat2d = feat.reshape(M, feat_dim)

    tile, steps = _choose_tile(M, tile_m, min_grid_steps)

    # ---- compiler params ----------------------------------------------------
    in_itemsize = max(pos.dtype.itemsize, feat.dtype.itemsize)
    bufs = input_buffers if (input_buffers and steps >= input_buffers) else 2
    cp_kwargs = dict(dimension_semantics=("parallel",))
    est = _vmem_bytes_estimate(tile, pos_dim, feat_dim, hidden, num_cls,
                               in_itemsize, bufs)
    if est > 30 * 1024 * 1024:
        # Raise above the 32 MiB scoped default; 48 MiB keeps headroom under
        # v7x's 64 MiB physical VMEM (v5e/v6e have 128 MiB, also safe).
        cp_kwargs["vmem_limit_bytes"] = min(int(est * 3 // 2), 48 * 1024 * 1024)

    # Weights / biases: full-array blocks with a constant index_map -> fetched
    # once and resident in VMEM across all grid steps.
    def const_spec(arr):
        nd = arr.ndim
        return pl.BlockSpec(arr.shape, lambda i, _nd=nd: (0,) * _nd)

    def build(token_buffers):
        tok_kw = {}
        if token_buffers is not None and steps >= token_buffers:
            # Deeper pipelining on the token streams: per-tile compute is short,
            # so an extra buffer hides the input DMA (tile is <=200 KB).
            tok_kw["pipeline_mode"] = pl.Buffered(token_buffers)
        return pl.pallas_call(
            _uno_decoder_kernel,
            out_shape=jax.ShapeDtypeStruct((M, num_cls), out_dtype),
            grid_spec=pltpu.PrefetchScalarGridSpec(
                num_scalar_prefetch=0,
                grid=(steps,),
                in_specs=[
                    pl.BlockSpec((tile, pos_dim), lambda i: (i, 0), **tok_kw),
                    pl.BlockSpec((tile, feat_dim), lambda i: (i, 0), **tok_kw),
                    const_spec(packed["wp"]), const_spec(packed["bp"]),
                    const_spec(packed["wf"]), const_spec(packed["bf"]),
                    const_spec(packed["wres"]), const_spec(packed["bres"]),
                    const_spec(packed["wo"]), const_spec(packed["bo"]),
                ],
                out_specs=pl.BlockSpec((tile, num_cls), lambda i: (i, 0)),
            ),
            compiler_params=pltpu.CompilerParams(**cp_kwargs),
        )

    args = (pos2d, feat2d,
            packed["wp"], packed["bp"], packed["wf"], packed["bf"],
            packed["wres"], packed["bres"], packed["wo"], packed["bo"])
    try:
        out2d = build(input_buffers)(*args)
    except Exception:
        if input_buffers is None:
            raise
        out2d = build(None)(*args)      # fall back to default double-buffering

    return out2d.reshape(B, N, num_cls)


# ----------------------------------------------------------------------------
# Parameters
# ----------------------------------------------------------------------------
def init_params(key, pos_dim, feat_dim, hidden, num_cls):
    """Canonical f32 params (weights as (in, out); biases as (1, out))."""
    ks = jax.random.split(key, 12)

    def lin(kw, kb, din, dout):
        w = jax.random.normal(kw, (din, dout), jnp.float32) * (1.0 / jnp.sqrt(din))
        b = jax.random.normal(kb, (1, dout), jnp.float32) * 0.01
        return w, b

    wp, bp = lin(ks[0], ks[1], pos_dim, hidden)
    wf, bf = lin(ks[2], ks[3], feat_dim, hidden)
    w1, b1 = lin(ks[4], ks[5], hidden, hidden)
    w2, b2 = lin(ks[6], ks[7], hidden, hidden)
    w3, b3 = lin(ks[8], ks[9], hidden, hidden)
    wo, bo = lin(ks[10], ks[11], hidden, num_cls)
    return dict(wp=wp, bp=bp, wf=wf, bf=bf, w1=w1, b1=b1,
                w2=w2, b2=b2, w3=w3, b3=b3, wo=wo, bo=bo)


def pack_params(p, compute_dtype=jnp.bfloat16):
    """Pack the 12 canonical arrays into 10 kernel inputs.

    Weights are stored in the MXU compute dtype (bf16); biases stay f32 since
    they are added to f32 accumulators.  Res-block weights/biases are stacked.
    """
    wres = jnp.stack([p["w1"], p["w2"], p["w3"]])                # (3, H, H)
    bres = jnp.stack([p["b1"], p["b2"], p["b3"]])                # (3, 1, H) f32
    return dict(
        wp=p["wp"].astype(compute_dtype), bp=p["bp"],
        wf=p["wf"].astype(compute_dtype), bf=p["bf"],
        wres=wres.astype(compute_dtype), bres=bres,
        wo=p["wo"].astype(compute_dtype), bo=p["bo"],
    )


# ----------------------------------------------------------------------------
# Pure-JAX reference (of the quirky PyTorch forward) for validation
# ----------------------------------------------------------------------------
def _reference(pos, feat, p, compute_dtype=jnp.float32):
    f32 = jnp.float32
    relu = lambda v: jnp.maximum(v, 0.0)

    def lin(x, w, b):
        return jnp.dot(x.astype(compute_dtype), w.astype(compute_dtype),
                       preferred_element_type=f32) + b

    pos_proj = lin(pos, p["wp"], p["bp"])
    feat_proj = lin(feat, p["wf"], p["bf"])
    x = pos_proj + feat_proj
    out1 = relu(x + relu(lin(x, p["w1"], p["b1"])))
    out2 = relu(out1 + relu(lin(out1 + feat_proj, p["w2"], p["b2"])))
    out3 = relu(out2 + relu(lin(out2 + feat_proj, p["w3"], p["b3"])))
    logits = lin(out3, p["wo"], p["bo"])
    return jax.nn.softmax(logits, axis=-1)


if __name__ == "__main__":
    pos_dim, feat_dim, hidden, num_cls = 8, 16, 32, 8
    key = jax.random.PRNGKey(0)
    k_pos, k_feat, k_params, k_pos2, k_feat2 = jax.random.split(key, 5)

    params = init_params(k_params, pos_dim, feat_dim, hidden, num_cls)
    packed = pack_params(params)

    def check(probs, pos_bf, feat_bf, B, N, strict_f32):
        assert probs.shape == (B, N, num_cls)
        assert probs.dtype == jnp.float32
        pos2d = pos_bf.astype(jnp.float32).reshape(-1, pos_dim)
        feat2d = feat_bf.astype(jnp.float32).reshape(-1, feat_dim)
        ref_bf16 = _reference(pos2d, feat2d, params, jnp.bfloat16).reshape(B, N, num_cls)
        assert jnp.allclose(jnp.sum(probs, axis=-1), 1.0, atol=1e-3), \
            "softmax rows must sum to 1"
        assert jnp.allclose(probs, ref_bf16, atol=1e-2, rtol=1e-2), \
            "mismatch vs bf16-operand reference"
        if strict_f32:
            ref_f32 = _reference(pos2d, feat2d, params, jnp.float32).reshape(B, N, num_cls)
            assert jnp.allclose(probs, ref_f32, atol=5e-2, rtol=5e-2), \
                "mismatch vs f32 reference"

    # --- small case: single grid step ---------------------------------------
    B, N = 2, 64   # M = 128 tokens
    pos = jax.random.normal(k_pos, (B, N, pos_dim), jnp.float32).astype(jnp.bfloat16)
    feat = jax.random.normal(k_feat, (B, N, feat_dim), jnp.float32).astype(jnp.bfloat16)
    probs = jax.block_until_ready(uno_decoder_forward(pos, feat, packed))
    check(probs, pos, feat, B, N, strict_f32=True)

    # --- larger case: multi-step grid (megacore split + buffered inputs) ----
    B2, N2 = 4, 1024   # M = 4096 tokens -> 4 grid steps of 1024
    pos2 = jax.random.normal(k_pos2, (B2, N2, pos_dim), jnp.float32).astype(jnp.bfloat16)
    feat2 = jax.random.normal(k_feat2, (B2, N2, feat_dim), jnp.float32).astype(jnp.bfloat16)
    probs2 = jax.block_until_ready(uno_decoder_forward(pos2, feat2, packed))
    check(probs2, pos2, feat2, B2, N2, strict_f32=False)

    print("KERNEL_OK")
</pallas_src>

<mosaic_0001>
module attributes {stable_mosaic.version = 11 : i64} {
  func.func @_uno_decoder_kernel(%arg0: i32, %arg1: memref<128x8xbf16, #tpu.memory_space<vmem>>, %arg2: memref<128x16xbf16, #tpu.memory_space<vmem>>, %arg3: memref<8x32xbf16, #tpu.memory_space<vmem>>, %arg4: memref<1x32xf32, #tpu.memory_space<vmem>>, %arg5: memref<16x32xbf16, #tpu.memory_space<vmem>>, %arg6: memref<1x32xf32, #tpu.memory_space<vmem>>, %arg7: memref<3x32x32xbf16, #tpu.memory_space<vmem>>, %arg8: memref<3x1x32xf32, #tpu.memory_space<vmem>>, %arg9: memref<32x8xbf16, #tpu.memory_space<vmem>>, %arg10: memref<1x8xf32, #tpu.memory_space<vmem>>, %arg11: memref<128x8xf32, #tpu.memory_space<vmem>>) attributes {dimension_semantics = [#tpu.dimension_semantics<parallel>], iteration_bounds = array<i64: 1>, scalar_prefetch = 0 : i64, scratch_operands = 0 : i64, tpu.core_type = #tpu.core_type<tc>, window_params = [{transform_indices = @transform_0, window_bounds = array<i64: 128, 8>}, {transform_indices = @transform_1, window_bounds = array<i64: 128, 16>}, {pipeline_mode = #tpu.pipeline_mode<synchronous>, transform_indices = @transform_2, window_bounds = array<i64: 8, 32>}, {pipeline_mode = #tpu.pipeline_mode<synchronous>, transform_indices = @transform_3, window_bounds = array<i64: 1, 32>}, {pipeline_mode = #tpu.pipeline_mode<synchronous>, transform_indices = @transform_4, window_bounds = array<i64: 16, 32>}, {pipeline_mode = #tpu.pipeline_mode<synchronous>, transform_indices = @transform_5, window_bounds = array<i64: 1, 32>}, {pipeline_mode = #tpu.pipeline_mode<synchronous>, transform_indices = @transform_6, window_bounds = array<i64: 3, 32, 32>}, {pipeline_mode = #tpu.pipeline_mode<synchronous>, transform_indices = @transform_7, window_bounds = array<i64: 3, 1, 32>}, {pipeline_mode = #tpu.pipeline_mode<synchronous>, transform_indices = @transform_8, window_bounds = array<i64: 32, 8>}, {pipeline_mode = #tpu.pipeline_mode<synchronous>, transform_indices = @transform_9, window_bounds = array<i64: 1, 8>}, {transform_indices = @transform_10, window_bounds = array<i64: 128, 8>}]} {
    %c0 = arith.constant 0 : index
    %c0_0 = arith.constant 0 : index
    %0 = vector.load %arg1[%c0, %c0_0] : memref<128x8xbf16, #tpu.memory_space<vmem>>, vector<128x8xbf16>
    %c0_1 = arith.constant 0 : index
    %c0_2 = arith.constant 0 : index
    %1 = vector.load %arg2[%c0_1, %c0_2] : memref<128x16xbf16, #tpu.memory_space<vmem>>, vector<128x16xbf16>
    %c0_3 = arith.constant 0 : index
    %c0_4 = arith.constant 0 : index
    %2 = vector.load %arg5[%c0_3, %c0_4] : memref<16x32xbf16, #tpu.memory_space<vmem>>, vector<16x32xbf16>
    %cst = arith.constant dense<0.000000e+00> : vector<128x32xf32>
    %3 = tpu.matmul %1, %2, %cst {dimension_numbers = #tpu.dot_dimension_numbers<[1], [0], [0], [1], [0, 0, 1, 1], [], []>} : vector<128x16xbf16>, vector<16x32xbf16>, vector<128x32xf32> -> vector<128x32xf32>
    %c0_5 = arith.constant 0 : index
    %c0_6 = arith.constant 0 : index
    %4 = vector.load %arg6[%c0_5, %c0_6] : memref<1x32xf32, #tpu.memory_space<vmem>>, vector<1x32xf32>
    %5 = vector.broadcast %4 : vector<1x32xf32> to vector<128x32xf32>
    %6 = arith.addf %3, %5 : vector<128x32xf32>
    %c0_7 = arith.constant 0 : index
    %c0_8 = arith.constant 0 : index
    %7 = vector.load %arg3[%c0_7, %c0_8] : memref<8x32xbf16, #tpu.memory_space<vmem>>, vector<8x32xbf16>
    %cst_9 = arith.constant dense<0.000000e+00> : vector<128x32xf32>
    %8 = tpu.matmul %0, %7, %cst_9 {dimension_numbers = #tpu.dot_dimension_numbers<[1], [0], [0], [1], [0, 0, 1, 1], [], []>} : vector<128x8xbf16>, vector<8x32xbf16>, vector<128x32xf32> -> vector<128x32xf32>
    %c0_10 = arith.constant 0 : index
    %c0_11 = arith.constant 0 : index
    %9 = vector.load %arg4[%c0_10, %c0_11] : memref<1x32xf32, #tpu.memory_space<vmem>>, vector<1x32xf32>
    %10 = vector.broadcast %9 : vector<1x32xf32> to vector<128x32xf32>
    %11 = arith.addf %8, %10 : vector<128x32xf32>
    %12 = arith.addf %11, %6 : vector<128x32xf32>
    %13 = arith.truncf %12 : vector<128x32xf32> to vector<128x32xbf16>
    %c0_12 = arith.constant 0 : index
    %c0_13 = arith.constant 0 : index
    %c0_14 = arith.constant 0 : index
    %14 = vector.load %arg7[%c0_12, %c0_13, %c0_14] : memref<3x32x32xbf16, #tpu.memory_space<vmem>>, vector<1x32x32xbf16>
    %15 = vector.shape_cast %14 : vector<1x32x32xbf16> to vector<32x32xbf16>
    %cst_15 = arith.constant dense<0.000000e+00> : vector<128x32xf32>
    %16 = tpu.matmul %13, %15, %cst_15 {dimension_numbers = #tpu.dot_dimension_numbers<[1], [0], [0], [1], [0, 0, 1, 1], [], []>} : vector<128x32xbf16>, vector<32x32xbf16>, vector<128x32xf32> -> vector<128x32xf32>
    %c0_16 = arith.constant 0 : index
    %c0_17 = arith.constant 0 : index
    %c0_18 = arith.constant 0 : index
    %17 = vector.load %arg8[%c0_16, %c0_17, %c0_18] : memref<3x1x32xf32, #tpu.memory_space<vmem>>, vector<1x1x32xf32>
    %18 = vector.shape_cast %17 : vector<1x1x32xf32> to vector<1x32xf32>
    %19 = vector.broadcast %18 : vector<1x32xf32> to vector<128x32xf32>
    %20 = arith.addf %16, %19 : vector<128x32xf32>
    %cst_19 = arith.constant 0.000000e+00 : f32
    %21 = vector.broadcast %cst_19 : f32 to vector<128x32xf32>
    %22 = arith.maximumf %20, %21 : vector<128x32xf32>
    %23 = arith.addf %12, %22 : vector<128x32xf32>
    %cst_20 = arith.constant 0.000000e+00 : f32
    %24 = vector.broadcast %cst_20 : f32 to vector<128x32xf32>
    %25 = arith.maximumf %23, %24 : vector<128x32xf32>
    %26 = arith.addf %25, %6 : vector<128x32xf32>
    %27 = arith.truncf %26 : vector<128x32xf32> to vector<128x32xbf16>
    %c1 = arith.constant 1 : index
    %c0_21 = arith.constant 0 : index
    %c0_22 = arith.constant 0 : index
    %28 = vector.load %arg7[%c1, %c0_21, %c0_22] : memref<3x32x32xbf16, #tpu.memory_space<vmem>>, vector<1x32x32xbf16>
    %29 = vector.shape_cast %28 : vector<1x32x32xbf16> to vector<32x32xbf16>
    %cst_23 = arith.constant dense<0.000000e+00> : vector<128x32xf32>
    %30 = tpu.matmul %27, %29, %cst_23 {dimension_numbers = #tpu.dot_dimension_numbers<[1], [0], [0], [1], [0, 0, 1, 1], [], []>} : vector<128x32xbf16>, vector<32x32xbf16>, vector<128x32xf32> -> vector<128x32xf32>
    %c1_24 = arith.constant 1 : index
    %c0_25 = arith.constant 0 : index
    %c0_26 = arith.constant 0 : index
    %31 = vector.load %arg8[%c1_24, %c0_25, %c0_26] : memref<3x1x32xf32, #tpu.memory_space<vmem>>, vector<1x1x32xf32>
    %32 = vector.shape_cast %31 : vector<1x1x32xf32> to vector<1x32xf32>
    %33 = vector.broadcast %32 : vector<1x32xf32> to vector<128x32xf32>
    %34 = arith.addf %30, %33 : vector<128x32xf32>
    %cst_27 = arith.constant 0.000000e+00 : f32
    %35 = vector.broadcast %cst_27 : f32 to vector<128x32xf32>
    %36 = arith.maximumf %34, %35 : vector<128x32xf32>
    %37 = arith.addf %25, %36 : vector<128x32xf32>
    %cst_28 = arith.constant 0.000000e+00 : f32
    %38 = vector.broadcast %cst_28 : f32 to vector<128x32xf32>
    %39 = arith.maximumf %37, %38 : vector<128x32xf32>
    %40 = arith.addf %39, %6 : vector<128x32xf32>
    %41 = arith.truncf %40 : vector<128x32xf32> to vector<128x32xbf16>
    %c2 = arith.constant 2 : index
    %c0_29 = arith.constant 0 : index
    %c0_30 = arith.constant 0 : index
    %42 = vector.load %arg7[%c2, %c0_29, %c0_30] : memref<3x32x32xbf16, #tpu.memory_space<vmem>>, vector<1x32x32xbf16>
    %43 = vector.shape_cast %42 : vector<1x32x32xbf16> to vector<32x32xbf16>
    %cst_31 = arith.constant dense<0.000000e+00> : vector<128x32xf32>
    %44 = tpu.matmul %41, %43, %cst_31 {dimension_numbers = #tpu.dot_dimension_numbers<[1], [0], [0], [1], [0, 0, 1, 1], [], []>} : vector<128x32xbf16>, vector<32x32xbf16>, vector<128x32xf32> -> vector<128x32xf32>
    %c2_32 = arith.constant 2 : index
    %c0_33 = arith.constant 0 : index
    %c0_34 = arith.constant 0 : index
    %45 = vector.load %arg8[%c2_32, %c0_33, %c0_34] : memref<3x1x32xf32, #tpu.memory_space<vmem>>, vector<1x1x32xf32>
    %46 = vector.shape_cast %45 : vector<1x1x32xf32> to vector<1x32xf32>
    %47 = vector.broadcast %46 : vector<1x32xf32> to vector<128x32xf32>
    %48 = arith.addf %44, %47 : vector<128x32xf32>
    %cst_35 = arith.constant 0.000000e+00 : f32
    %49 = vector.broadcast %cst_35 : f32 to vector<128x32xf32>
    %50 = arith.maximumf %48, %49 : vector<128x32xf32>
    %51 = arith.addf %39, %50 : vector<128x32xf32>
    %cst_36 = arith.constant 0.000000e+00 : f32
    %52 = vector.broadcast %cst_36 : f32 to vector<128x32xf32>
    %53 = arith.maximumf %51, %52 : vector<128x32xf32>
    %54 = arith.truncf %53 : vector<128x32xf32> to vector<128x32xbf16>
    %c0_37 = arith.constant 0 : index
    %c0_38 = arith.constant 0 : index
    %55 = vector.load %arg9[%c0_37, %c0_38] : memref<32x8xbf16, #tpu.memory_space<vmem>>, vector<32x8xbf16>
    %cst_39 = arith.constant dense<0.000000e+00> : vector<128x8xf32>
    %56 = tpu.matmul %54, %55, %cst_39 {dimension_numbers = #tpu.dot_dimension_numbers<[1], [0], [0], [1], [0, 0, 1, 1], [], []>} : vector<128x32xbf16>, vector<32x8xbf16>, vector<128x8xf32> -> vector<128x8xf32>
    %c0_40 = arith.constant 0 : index
    %c0_41 = arith.constant 0 : index
    %57 = vector.load %arg10[%c0_40, %c0_41] : memref<1x8xf32, #tpu.memory_space<vmem>>, vector<1x8xf32>
    %58 = vector.broadcast %57 : vector<1x8xf32> to vector<128x8xf32>
    %59 = arith.addf %56, %58 : vector<128x8xf32>
    %cst_42 = arith.constant dense<0xFF800000> : vector<128xf32>
    %60 = vector.multi_reduction <maximumf>, %59, %cst_42 [1] : vector<128x8xf32> to vector<128xf32>
    %61 = vector.shape_cast %60 : vector<128xf32> to vector<128x1xf32>
    %62 = vector.broadcast %61 : vector<128x1xf32> to vector<128x8xf32>
    %63 = arith.subf %59, %62 : vector<128x8xf32>
    %64 = math.exp %63 : vector<128x8xf32>
    %cst_43 = arith.constant dense<0.000000e+00> : vector<128xf32>
    %65 = vector.multi_reduction <add>, %64, %cst_43 [1] : vector<128x8xf32> to vector<128xf32>
    %66 = vector.shape_cast %65 : vector<128xf32> to vector<128x1xf32>
    %67 = tpu.reciprocal %66 : vector<128x1xf32> -> vector<128x1xf32>
    %68 = vector.broadcast %67 : vector<128x1xf32> to vector<128x8xf32>
    %69 = arith.mulf %64, %68 : vector<128x8xf32>
    %c0_44 = arith.constant 0 : index
    %c0_45 = arith.constant 0 : index
    %70 = vector.load %arg11[%c0_44, %c0_45] : memref<128x8xf32, #tpu.memory_space<vmem>>, vector<128x8xf32>
    tpu.vector_store %arg11[%c0_44, %c0_45], %69 {strides = array<i32>} : memref<128x8xf32, #tpu.memory_space<vmem>>, vector<128x8xf32>,
    return
  }
  func.func @transform_0(%arg0: i32) -> (i32, i32) {
    %c0_i32 = arith.constant 0 : i32
    %c0_i32_0 = arith.constant 0 : i32
    return %arg0, %c0_i32 : i32, i32
  }
  func.func @transform_1(%arg0: i32) -> (i32, i32) {
    %c0_i32 = arith.constant 0 : i32
    %c0_i32_0 = arith.constant 0 : i32
    return %arg0, %c0_i32 : i32, i32
  }
  func.func @transform_2(%arg0: i32) -> (i32, i32) {
    %c0_i32 = arith.constant 0 : i32
    %c0_i32_0 = arith.constant 0 : i32
    %c0_i32_1 = arith.constant 0 : i32
    return %c0_i32, %c0_i32_0 : i32, i32
  }
  func.func @transform_3(%arg0: i32) -> (i32, i32) {
    %c0_i32 = arith.constant 0 : i32
    %c0_i32_0 = arith.constant 0 : i32
    %c0_i32_1 = arith.constant 0 : i32
    return %c0_i32, %c0_i32_0 : i32, i32
  }
  func.func @transform_4(%arg0: i32) -> (i32, i32) {
    %c0_i32 = arith.constant 0 : i32
    %c0_i32_0 = arith.constant 0 : i32
    %c0_i32_1 = arith.constant 0 : i32
    return %c0_i32, %c0_i32_0 : i32, i32
  }
  func.func @transform_5(%arg0: i32) -> (i32, i32) {
    %c0_i32 = arith.constant 0 : i32
    %c0_i32_0 = arith.constant 0 : i32
    %c0_i32_1 = arith.constant 0 : i32
    return %c0_i32, %c0_i32_0 : i32, i32
  }
  func.func @transform_6(%arg0: i32) -> (i32, i32, i32) {
    %c0_i32 = arith.constant 0 : i32
    %c0_i32_0 = arith.constant 0 : i32
    %c0_i32_1 = arith.constant 0 : i32
    %c0_i32_2 = arith.constant 0 : i32
    return %c0_i32, %c0_i32_0, %c0_i32_1 : i32, i32, i32
  }
  func.func @transform_7(%arg0: i32) -> (i32, i32, i32) {
    %c0_i32 = arith.constant 0 : i32
    %c0_i32_0 = arith.constant 0 : i32
    %c0_i32_1 = arith.constant 0 : i32
    %c0_i32_2 = arith.constant 0 : i32
    return %c0_i32, %c0_i32_0, %c0_i32_1 : i32, i32, i32
  }
  func.func @transform_8(%arg0: i32) -> (i32, i32) {
    %c0_i32 = arith.constant 0 : i32
    %c0_i32_0 = arith.constant 0 : i32
    %c0_i32_1 = arith.constant 0 : i32
    return %c0_i32, %c0_i32_0 : i32, i32
  }
  func.func @transform_9(%arg0: i32) -> (i32, i32) {
    %c0_i32 = arith.constant 0 : i32
    %c0_i32_0 = arith.constant 0 : i32
    %c0_i32_1 = arith.constant 0 : i32
    return %c0_i32, %c0_i32_0 : i32, i32
  }
  func.func @transform_10(%arg0: i32) -> (i32, i32) {
    %c0_i32 = arith.constant 0 : i32
    %c0_i32_0 = arith.constant 0 : i32
    return %arg0, %c0_i32 : i32, i32
  }
}

module attributes {stable_mosaic.version = 11 : i64} {
  func.func @_uno_decoder_kernel(%arg0: i32, %arg1: memref<128x8xbf16, #tpu.memory_space<vmem>>, %arg2: memref<128x16xbf16, #tpu.memory_space<vmem>>, %arg3: memref<8x32xbf16, #tpu.memory_space<vmem>>, %arg4: memref<1x32xf32, #tpu.memory_space<vmem>>, %arg5: memref<16x32xbf16, #tpu.memory_space<vmem>>, %arg6: memref<1x32xf32, #tpu.memory_space<vmem>>, %arg7: memref<3x32x32xbf16, #tpu.memory_space<vmem>>, %arg8: memref<3x1x32xf32, #tpu.memory_space<vmem>>, %arg9: memref<32x8xbf16, #tpu.memory_space<vmem>>, %arg10: memref<1x8xf32, #tpu.memory_space<vmem>>, %arg11: memref<128x8xf32, #tpu.memory_space<vmem>>) attributes {dimension_semantics = [#tpu.dimension_semantics<parallel>], iteration_bounds = array<i64: 1>, scalar_prefetch = 0 : i64, scratch_operands = 0 : i64, tpu.core_type = #tpu.core_type<tc>, window_params = [{transform_indices = @transform_0, window_bounds = array<i64: 128, 8>}, {transform_indices = @transform_1, window_bounds = array<i64: 128, 16>}, {pipeline_mode = #tpu.pipeline_mode<synchronous>, transform_indices = @transform_2, window_bounds = array<i64: 8, 32>}, {pipeline_mode = #tpu.pipeline_mode<synchronous>, transform_indices = @transform_3, window_bounds = array<i64: 1, 32>}, {pipeline_mode = #tpu.pipeline_mode<synchronous>, transform_indices = @transform_4, window_bounds = array<i64: 16, 32>}, {pipeline_mode = #tpu.pipeline_mode<synchronous>, transform_indices = @transform_5, window_bounds = array<i64: 1, 32>}, {pipeline_mode = #tpu.pipeline_mode<synchronous>, transform_indices = @transform_6, window_bounds = array<i64: 3, 32, 32>}, {pipeline_mode = #tpu.pipeline_mode<synchronous>, transform_indices = @transform_7, window_bounds = array<i64: 3, 1, 32>}, {pipeline_mode = #tpu.pipeline_mode<synchronous>, transform_indices = @transform_8, window_bounds = array<i64: 32, 8>}, {pipeline_mode = #tpu.pipeline_mode<synchronous>, transform_indices = @transform_9, window_bounds = array<i64: 1, 8>}, {transform_indices = @transform_10, window_bounds = array<i64: 128, 8>}]} {
    %c0 = arith.constant 0 : index
    %c0_0 = arith.constant 0 : index
    %0 = vector.load %arg1[%c0, %c0_0] : memref<128x8xbf16, #tpu.memory_space<vmem>>, vector<128x8xbf16>
    %c0_1 = arith.constant 0 : index
    %c0_2 = arith.constant 0 : index
    %1 = vector.load %arg2[%c0_1, %c0_2] : memref<128x16xbf16, #tpu.memory_space<vmem>>, vector<128x16xbf16>
    %c0_3 = arith.constant 0 : index
    %c0_4 = arith.constant 0 : index
    %2 = vector.load %arg5[%c0_3, %c0_4] : memref<16x32xbf16, #tpu.memory_space<vmem>>, vector<16x32xbf16>
    %cst = arith.constant dense<0.000000e+00> : vector<128x32xf32>
    %3 = tpu.matmul %1, %2, %cst {dimension_numbers = #tpu.dot_dimension_numbers<[1], [0], [0], [1], [0, 0, 1, 1], [], []>} : vector<128x16xbf16>, vector<16x32xbf16>, vector<128x32xf32> -> vector<128x32xf32>
    %c0_5 = arith.constant 0 : index
    %c0_6 = arith.constant 0 : index
    %4 = vector.load %arg6[%c0_5, %c0_6] : memref<1x32xf32, #tpu.memory_space<vmem>>, vector<1x32xf32>
    %5 = vector.broadcast %4 : vector<1x32xf32> to vector<128x32xf32>
    %6 = arith.addf %3, %5 : vector<128x32xf32>
    %c0_7 = arith.constant 0 : index
    %c0_8 = arith.constant 0 : index
    %7 = vector.load %arg3[%c0_7, %c0_8] : memref<8x32xbf16, #tpu.memory_space<vmem>>, vector<8x32xbf16>
    %cst_9 = arith.constant dense<0.000000e+00> : vector<128x32xf32>
    %8 = tpu.matmul %0, %7, %cst_9 {dimension_numbers = #tpu.dot_dimension_numbers<[1], [0], [0], [1], [0, 0, 1, 1], [], []>} : vector<128x8xbf16>, vector<8x32xbf16>, vector<128x32xf32> -> vector<128x32xf32>
    %c0_10 = arith.constant 0 : index
    %c0_11 = arith.constant 0 : index
    %9 = vector.load %arg4[%c0_10, %c0_11] : memref<1x32xf32, #tpu.memory_space<vmem>>, vector<1x32xf32>
    %10 = vector.broadcast %9 : vector<1x32xf32> to vector<128x32xf32>
    %11 = arith.addf %8, %10 : vector<128x32xf32>
    %12 = arith.addf %11, %6 : vector<128x32xf32>
    %13 = arith.truncf %12 : vector<128x32xf32> to vector<128x32xbf16>
    %c0_12 = arith.constant 0 : index
    %c0_13 = arith.constant 0 : index
    %c0_14 = arith.constant 0 : index
    %14 = vector.load %arg7[%c0_12, %c0_13, %c0_14] : memref<3x32x32xbf16, #tpu.memory_space<vmem>>, vector<1x32x32xbf16>
    %15 = vector.shape_cast %14 : vector<1x32x32xbf16> to vector<32x32xbf16>
    %cst_15 = arith.constant dense<0.000000e+00> : vector<128x32xf32>
    %16 = tpu.matmul %13, %15, %cst_15 {dimension_numbers = #tpu.dot_dimension_numbers<[1], [0], [0], [1], [0, 0, 1, 1], [], []>} : vector<128x32xbf16>, vector<32x32xbf16>, vector<128x32xf32> -> vector<128x32xf32>
    %c0_16 = arith.constant 0 : index
    %c0_17 = arith.constant 0 : index
    %c0_18 = arith.constant 0 : index
    %17 = vector.load %arg8[%c0_16, %c0_17, %c0_18] : memref<3x1x32xf32, #tpu.memory_space<vmem>>, vector<1x1x32xf32>
    %18 = vector.shape_cast %17 : vector<1x1x32xf32> to vector<1x32xf32>
    %19 = vector.broadcast %18 : vector<1x32xf32> to vector<128x32xf32>
    %20 = arith.addf %16, %19 : vector<128x32xf32>
    %cst_19 = arith.constant 0.000000e+00 : f32
    %21 = vector.broadcast %cst_19 : f32 to vector<128x32xf32>
    %22 = arith.maximumf %20, %21 : vector<128x32xf32>
    %23 = arith.addf %12, %22 : vector<128x32xf32>
    %cst_20 = arith.constant 0.000000e+00 : f32
    %24 = vector.broadcast %cst_20 : f32 to vector<128x32xf32>
    %25 = arith.maximumf %23, %24 : vector<128x32xf32>
    %26 = arith.addf %25, %6 : vector<128x32xf32>
    %27 = arith.truncf %26 : vector<128x32xf32> to vector<128x32xbf16>
    %c1 = arith.constant 1 : index
    %c0_21 = arith.constant 0 : index
    %c0_22 = arith.constant 0 : index
    %28 = vector.load %arg7[%c1, %c0_21, %c0_22] : memref<3x32x32xbf16, #tpu.memory_space<vmem>>, vector<1x32x32xbf16>
    %29 = vector.shape_cast %28 : vector<1x32x32xbf16> to vector<32x32xbf16>
    %cst_23 = arith.constant dense<0.000000e+00> : vector<128x32xf32>
    %30 = tpu.matmul %27, %29, %cst_23 {dimension_numbers = #tpu.dot_dimension_numbers<[1], [0], [0], [1], [0, 0, 1, 1], [], []>} : vector<128x32xbf16>, vector<32x32xbf16>, vector<128x32xf32> -> vector<128x32xf32>
    %c1_24 = arith.constant 1 : index
    %c0_25 = arith.constant 0 : index
    %c0_26 = arith.constant 0 : index
    %31 = vector.load %arg8[%c1_24, %c0_25, %c0_26] : memref<3x1x32xf32, #tpu.memory_space<vmem>>, vector<1x1x32xf32>
    %32 = vector.shape_cast %31 : vector<1x1x32xf32> to vector<1x32xf32>
    %33 = vector.broadcast %32 : vector<1x32xf32> to vector<128x32xf32>
    %34 = arith.addf %30, %33 : vector<128x32xf32>
    %cst_27 = arith.constant 0.000000e+00 : f32
    %35 = vector.broadcast %cst_27 : f32 to vector<128x32xf32>
    %36 = arith.maximumf %34, %35 : vector<128x32xf32>
    %37 = arith.addf %25, %36 : vector<128x32xf32>
    %cst_28 = arith.constant 0.000000e+00 : f32
    %38 = vector.broadcast %cst_28 : f32 to vector<128x32xf32>
    %39 = arith.maximumf %37, %38 : vector<128x32xf32>
    %40 = arith.addf %39, %6 : vector<128x32xf32>
    %41 = arith.truncf %40 : vector<128x32xf32> to vector<128x32xbf16>
    %c2 = arith.constant 2 : index
    %c0_29 = arith.constant 0 : index
    %c0_30 = arith.constant 0 : index
    %42 = vector.load %arg7[%c2, %c0_29, %c0_30] : memref<3x32x32xbf16, #tpu.memory_space<vmem>>, vector<1x32x32xbf16>
    %43 = vector.shape_cast %42 : vector<1x32x32xbf16> to vector<32x32xbf16>
    %cst_31 = arith.constant dense<0.000000e+00> : vector<128x32xf32>
    %44 = tpu.matmul %41, %43, %cst_31 {dimension_numbers = #tpu.dot_dimension_numbers<[1], [0], [0], [1], [0, 0, 1, 1], [], []>} : vector<128x32xbf16>, vector<32x32xbf16>, vector<128x32xf32> -> vector<128x32xf32>
    %c2_32 = arith.constant 2 : index
    %c0_33 = arith.constant 0 : index
    %c0_34 = arith.constant 0 : index
    %45 = vector.load %arg8[%c2_32, %c0_33, %c0_34] : memref<3x1x32xf32, #tpu.memory_space<vmem>>, vector<1x1x32xf32>
    %46 = vector.shape_cast %45 : vector<1x1x32xf32> to vector<1x32xf32>
    %47 = vector.broadcast %46 : vector<1x32xf32> to vector<128x32xf32>
    %48 = arith.addf %44, %47 : vector<128x32xf32>
    %cst_35 = arith.constant 0.000000e+00 : f32
    %49 = vector.broadcast %cst_35 : f32 to vector<128x32xf32>
    %50 = arith.maximumf %48, %49 : vector<128x32xf32>
    %51 = arith.addf %39, %50 : vector<128x32xf32>
    %cst_36 = arith.constant 0.000000e+00 : f32
    %52 = vector.broadcast %cst_36 : f32 to vector<128x32xf32>
    %53 = arith.maximumf %51, %52 : vector<128x32xf32>
    %54 = arith.truncf %53 : vector<128x32xf32> to vector<128x32xbf16>
    %c0_37 = arith.constant 0 : index
    %c0_38 = arith.constant 0 : index
    %55 = vector.load %arg9[%c0_37, %c0_38] : memref<32x8xbf16, #tpu.memory_space<vmem>>, vector<32x8xbf16>
    %cst_39 = arith.constant dense<0.000000e+00> : vector<128x8xf32>
    %56 = tpu.matmul %54, %55, %cst_39 {dimension_numbers = #tpu.dot_dimension_numbers<[1], [0], [0], [1], [0, 0, 1, 1], [], []>} : vector<128x32xbf16>, vector<32x8xbf16>, vector<128x8xf32> -> vector<128x8xf32>
    %c0_40 = arith.constant 0 : index
    %c0_41 = arith.constant 0 : index
    %57 = vector.load %arg10[%c0_40, %c0_41] : memref<1x8xf32, #tpu.memory_space<vmem>>, vector<1x8xf32>
    %58 = vector.broadcast %57 : vector<1x8xf32> to vector<128x8xf32>
    %59 = arith.addf %56, %58 : vector<128x8xf32>
    %cst_42 = arith.constant dense<0xFF800000> : vector<128xf32>
    %60 = vector.multi_reduction <maximumf>, %59, %cst_42 [1] : vector<128x8xf32> to vector<128xf32>
    %61 = vector.shape_cast %60 : vector<128xf32> to vector<128x1xf32>
    %62 = vector.broadcast %61 : vector<128x1xf32> to vector<128x8xf32>
    %63 = arith.subf %59, %62 : vector<128x8xf32>
    %64 = math.exp %63 : vector<128x8xf32>
    %cst_43 = arith.constant dense<0.000000e+00> : vector<128xf32>
    %65 = vector.multi_reduction <add>, %64, %cst_43 [1] : vector<128x8xf32> to vector<128xf32>
    %66 = vector.shape_cast %65 : vector<128xf32> to vector<128x1xf32>
    %67 = tpu.reciprocal %66 : vector<128x1xf32> -> vector<128x1xf32>
    %68 = vector.broadcast %67 : vector<128x1xf32> to vector<128x8xf32>
    %69 = arith.mulf %64, %68 : vector<128x8xf32>
    %c0_44 = arith.constant 0 : index
    %c0_45 = arith.constant 0 : index
    %70 = vector.load %arg11[%c0_44, %c0_45] : memref<128x8xf32, #tpu.memory_space<vmem>>, vector<128x8xf32>
    tpu.vector_store %arg11[%c0_44, %c0_45], %69 {strides = array<i32>} : memref<128x8xf32, #tpu.memory_space<vmem>>, vector<128x8xf32>,
    return
  }
  func.func @transform_0(%arg0: i32) -> (i32, i32) {
    %c0_i32 = arith.constant 0 : i32
    %c0_i32_0 = arith.constant 0 : i32
    return %arg0, %c0_i32 : i32, i32
  }
  func.func @transform_1(%arg0: i32) -> (i32, i32) {
    %c0_i32 = arith.constant 0 : i32
    %c0_i32_0 = arith.constant 0 : i32
    return %arg0, %c0_i32 : i32, i32
  }
  func.func @transform_2(%arg0: i32) -> (i32, i32) {
    %c0_i32 = arith.constant 0 : i32
    %c0_i32_0 = arith.constant 0 : i32
    %c0_i32_1 = arith.constant 0 : i32
    return %c0_i32, %c0_i32_0 : i32, i32
  }
  func.func @transform_3(%arg0: i32) -> (i32, i32) {
    %c0_i32 = arith.constant 0 : i32
    %c0_i32_0 = arith.constant 0 : i32
    %c0_i32_1 = arith.constant 0 : i32
    return %c0_i32, %c0_i32_0 : i32, i32
  }
  func.func @transform_4(%arg0: i32) -> (i32, i32) {
    %c0_i32 = arith.constant 0 : i32
    %c0_i32_0 = arith.constant 0 : i32
    %c0_i32_1 = arith.constant 0 : i32
    return %c0_i32, %c0_i32_0 : i32, i32
  }
  func.func @transform_5(%arg0: i32) -> (i32, i32) {
    %c0_i32 = arith.constant 0 : i32
    %c0_i32_0 = arith.constant 0 : i32
    %c0_i32_1 = arith.constant 0 : i32
    return %c0_i32, %c0_i32_0 : i32, i32
  }
  func.func @transform_6(%arg0: i32) -> (i32, i32, i32) {
    %c0_i32 = arith.constant 0 : i32
    %c0_i32_0 = arith.constant 0 : i32
    %c0_i32_1 = arith.constant 0 : i32
    %c0_i32_2 = arith.constant 0 : i32
    return %c0_i32, %c0_i32_0, %c0_i32_1 : i32, i32, i32
  }
  func.func @transform_7(%arg0: i32) -> (i32, i32, i32) {
    %c0_i32 = arith.constant 0 : i32
    %c0_i32_0 = arith.constant 0 : i32
    %c0_i32_1 = arith.constant 0 : i32
    %c0_i32_2 = arith.constant 0 : i32
    return %c0_i32, %c0_i32_0, %c0_i32_1 : i32, i32, i32
  }
  func.func @transform_8(%arg0: i32) -> (i32, i32) {
    %c0_i32 = arith.constant 0 : i32
    %c0_i32_0 = arith.constant 0 : i32
    %c0_i32_1 = arith.constant 0 : i32
    return %c0_i32, %c0_i32_0 : i32, i32
  }
  func.func @transform_9(%arg0: i32) -> (i32, i32) {
    %c0_i32 = arith.constant 0 : i32
    %c0_i32_0 = arith.constant 0 : i32
    %c0_i32_1 = arith.constant 0 : i32
    return %c0_i32, %c0_i32_0 : i32, i32
  }
  func.func @transform_10(%arg0: i32) -> (i32, i32) {
    %c0_i32 = arith.constant 0 : i32
    %c0_i32_0 = arith.constant 0 : i32
    return %arg0, %c0_i32 : i32, i32
  }
}

</mosaic_0001>

<llo_original>
// kernel: tpu_custom_call.1
$region0: #{tpu_custom_call.1}
  #allocation0 [shape = 'u32[]', space=smem, size = 0x4, offset = 0x4, fixed_abs, tag = 'smem constant byte address 0x4 - core index']
  #allocation1 [shape = 'u32[144,128]{1,0:T(1,128)}', space=vmem, size = 0x12000, scoped, tag = 'internal scratch']
  %s0 = inlined_call_operand.vmem [shape: bf16[128,8], index: 0, kind: input, shape index: {}]
  %s1 = inlined_call_operand.vmem [shape: bf16[128,16], index: 1, kind: input, shape index: {}]
  %s2 = inlined_call_operand.vmem [shape: bf16[8,32], index: 2, kind: input, shape index: {}]
  %s3 = inlined_call_operand.vmem [shape: f32[1,32], index: 3, kind: input, shape index: {}]
  %s4 = inlined_call_operand.vmem [shape: bf16[16,32], index: 4, kind: input, shape index: {}]
  %s5 = inlined_call_operand.vmem [shape: f32[1,32], index: 5, kind: input, shape index: {}]
  %s6 = inlined_call_operand.vmem [shape: bf16[3,32,32], index: 6, kind: input, shape index: {}]
  %s7 = inlined_call_operand.vmem [shape: f32[3,1,32], index: 7, kind: input, shape index: {}]
  %s8 = inlined_call_operand.vmem [shape: bf16[32,8], index: 8, kind: input, shape index: {}]
  %s9 = inlined_call_operand.vmem [shape: f32[1,8], index: 9, kind: input, shape index: {}]
  %s10 = inlined_call_operand.vmem [shape: f32[128,8], index: 10, kind: output, shape index: {}]
  %s11 = sld [smem:[#allocation0]]
  $region50: #{tpu_custom_call.1} parent=0
    _
  %s13 = ssub.s32 1, %s11
  %s14 = scalar_select 0, %s13, %s11
  // Predicated region
  $region2: #{tpu_custom_call.1} parent=0 // pred_check
    _
  $region3: #{tpu_custom_call.1} parent=0 // pred_check_branch
    %16 = sbr.rel (0) target = $region5
  $region4: #{tpu_custom_call.1} parent=0 // pred_region
    _
  $region5: #{tpu_custom_call.1} parent=0 // pred_fallthru
    _
  // Predicated region
  $region6: #{tpu_custom_call.1} parent=0 // pred_check
    _
  $region7: #{tpu_custom_call.1} parent=0 // pred_check_branch
    %18 = sbr.rel (0) target = $region9
  $region8: #{tpu_custom_call.1} parent=0 // pred_region
    _
  $region9: #{tpu_custom_call.1} parent=0 // pred_fallthru
    _
  // Predicated region
  $region10: #{tpu_custom_call.1} parent=0 // pred_check
    _
  $region11: #{tpu_custom_call.1} parent=0 // pred_check_branch
    %20 = sbr.rel (0) target = $region13
  $region12: #{tpu_custom_call.1} parent=0 // pred_region
    _
  $region13: #{tpu_custom_call.1} parent=0 // pred_fallthru
    _
  // Predicated region
  $region14: #{tpu_custom_call.1} parent=0 // pred_check
    _
  $region15: #{tpu_custom_call.1} parent=0 // pred_check_branch
    %22 = sbr.rel (0) target = $region17
  $region16: #{tpu_custom_call.1} parent=0 // pred_region
    _
  $region17: #{tpu_custom_call.1} parent=0 // pred_fallthru
    _
  // Predicated region
  $region18: #{tpu_custom_call.1} parent=0 // pred_check
    _
  $region19: #{tpu_custom_call.1} parent=0 // pred_check_branch
    %24 = sbr.rel (0) target = $region21
  $region20: #{tpu_custom_call.1} parent=0 // pred_region
    _
  $region21: #{tpu_custom_call.1} parent=0 // pred_fallthru
    _
  // Predicated region
  $region22: #{tpu_custom_call.1} parent=0 // pred_check
    _
  $region23: #{tpu_custom_call.1} parent=0 // pred_check_branch
    %26 = sbr.rel (0) target = $region25
  $region24: #{tpu_custom_call.1} parent=0 // pred_region
    _
  $region25: #{tpu_custom_call.1} parent=0 // pred_fallthru
    _
  // Predicated region
  $region26: #{tpu_custom_call.1} parent=0 // pred_check
    _
  $region27: #{tpu_custom_call.1} parent=0 // pred_check_branch
    %28 = sbr.rel (0) target = $region29
  $region28: #{tpu_custom_call.1} parent=0 // pred_region
    _
  $region29: #{tpu_custom_call.1} parent=0 // pred_fallthru
    _
  // Predicated region
  $region30: #{tpu_custom_call.1} parent=0 // pred_check
    _
  $region31: #{tpu_custom_call.1} parent=0 // pred_check_branch
    %30 = sbr.rel (0) target = $region33
  $region32: #{tpu_custom_call.1} parent=0 // pred_region
    _
  $region33: #{tpu_custom_call.1} parent=0 // pred_fallthru
    _
  // Predicated region
  $region34: #{tpu_custom_call.1} parent=0 // pred_check
    _
  $region35: #{tpu_custom_call.1} parent=0 // pred_check_branch
    %32 = sbr.rel (0) target = $region37
  $region36: #{tpu_custom_call.1} parent=0 // pred_region
    _
  $region37: #{tpu_custom_call.1} parent=0 // pred_fallthru
    _
  // Predicated region
  $region38: #{tpu_custom_call.1} parent=0 // pred_check
    _
  $region39: #{tpu_custom_call.1} parent=0 // pred_check_branch
    %34 = sbr.rel (0) target = $region41
  $region40: #{tpu_custom_call.1} parent=0 // pred_region
    _
  $region41: #{tpu_custom_call.1} parent=0 // pred_fallthru
    _
  %v36 = vld [vmem:[%s0] sm:$0xf]
  %v37 = vld [vmem:[%s0 + $0x4] sm:$0xf]
  %v38 = vld [vmem:[%s0 + $0x8] sm:$0xf]
  %v39 = vld [vmem:[%s0 + $0xc] sm:$0xf]
  %v40 = vld [vmem:[%s0 + $0x10] sm:$0xf]
  %v41 = vld [vmem:[%s0 + $0x14] sm:$0xf]
  %v42 = vld [vmem:[%s0 + $0x18] sm:$0xf]
  %v43 = vld [vmem:[%s0 + $0x1c] sm:$0xf]
  %v44 = vld [vmem:[%s0 + $0x20] sm:$0xf]
  %v45 = vld [vmem:[%s0 + $0x24] sm:$0xf]
  %v46 = vld [vmem:[%s0 + $0x28] sm:$0xf]
  %v47 = vld [vmem:[%s0 + $0x2c] sm:$0xf]
  %v48 = vld [vmem:[%s0 + $0x30] sm:$0xf]
  %v49 = vld [vmem:[%s0 + $0x34] sm:$0xf]
  %v50 = vld [vmem:[%s0 + $0x38] sm:$0xf]
  %v51 = vld [vmem:[%s0 + $0x3c] sm:$0xf]
  %v52 = vld [vmem:[%s1] sm:$0xf]
  %v53 = vld [vmem:[%s1 + $0x4] sm:$0xf]
  %v54 = vld [vmem:[%s1 + $0x8] sm:$0xf]
  %v55 = vld [vmem:[%s1 + $0xc] sm:$0xf]
  %v56 = vld [vmem:[%s1 + $0x10] sm:$0xf]
  %v57 = vld [vmem:[%s1 + $0x14] sm:$0xf]
  %v58 = vld [vmem:[%s1 + $0x18] sm:$0xf]
  %v59 = vld [vmem:[%s1 + $0x1c] sm:$0xf]
  %v60 = vld [vmem:[%s1 + $0x20] sm:$0xf]
  %v61 = vld [vmem:[%s1 + $0x24] sm:$0xf]
  %v62 = vld [vmem:[%s1 + $0x28] sm:$0xf]
  %v63 = vld [vmem:[%s1 + $0x2c] sm:$0xf]
  %v64 = vld [vmem:[%s1 + $0x30] sm:$0xf]
  %v65 = vld [vmem:[%s1 + $0x34] sm:$0xf]
  %v66 = vld [vmem:[%s1 + $0x38] sm:$0xf]
  %v67 = vld [vmem:[%s1 + $0x3c] sm:$0xf]
  %v68 = vld [vmem:[%s4] sm:$0xf]
  %v69 = vld [vmem:[%s4 + $0x4] sm:$0xf]
  %v70 = vld [vmem:[%s5] sm:$0x1]
  %v72 = vlaneseq
  %v73 = vshrl.u32 %v72, 7
  %v74 = vsub.s32 0, %v73
  %v75 = vrot.slane %v70, %v74
  %v93 = vunpack.c.l.b16 %v52
  %v94 = vunpack.c.l.b16 %v53
  %v95 = vunpack.c.l.b16 %v54
  %v96 = vunpack.c.l.b16 %v55
  %v97 = vunpack.c.l.b16 %v56
  %v98 = vunpack.c.l.b16 %v57
  %v99 = vunpack.c.l.b16 %v58
  %v100 = vunpack.c.l.b16 %v59
  %v101 = vunpack.c.l.b16 %v60
  %v102 = vunpack.c.l.b16 %v61
  %v103 = vunpack.c.l.b16 %v62
  %v104 = vunpack.c.l.b16 %v63
  %v105 = vunpack.c.l.b16 %v64
  %v106 = vunpack.c.l.b16 %v65
  %v107 = vunpack.c.l.b16 %v66
  %v108 = vunpack.c.l.b16 %v67
  %v109 = vpack.c.b16 %v94, %v93
  %v110 = vpack.c.b16 %v96, %v95
  %v111 = vpack.c.b16 %v98, %v97
  %v112 = vpack.c.b16 %v100, %v99
  %v113 = vpack.c.b16 %v102, %v101
  %v114 = vpack.c.b16 %v104, %v103
  %v115 = vpack.c.b16 %v106, %v105
  %v116 = vpack.c.b16 %v108, %v107
  %v119 = vunpack.c.l.b16 %v68
  %v120 = vunpack.c.l.b16 %v69
  %v121 = vpack.c.b16 %v120, %v119
  %vm123 = vcmask 130048
  %v125 = vsel %vm123, %v109, 0
  %v128 = vsel %vm123, %v110, 0
  %v131 = vsel %vm123, %v111, 0
  %v134 = vsel %vm123, %v112, 0
  %v137 = vsel %vm123, %v113, 0
  %v140 = vsel %vm123, %v114, 0
  %v143 = vsel %vm123, %v115, 0
  %v146 = vsel %vm123, %v116, 0
  %148 = vmatprep.subr.bf16.mxu0 0
  %149 = vmatpush1.bf16.msra.mxu0 0
  %150 = vmatprep.subr.bf16.mxu0 0
  %151 = vmatpush1.bf16.msra.mxu0 0
  %152 = vmatprep.subr.bf16.mxu0 0
  %153 = vmatpush1.bf16.msra.mxu0 0
  %154 = vmatprep.subr.bf16.mxu0 0
  %155 = vmatpush1.bf16.msra.mxu0 0
  %156 = vmatprep.subr.bf16.mxu0 0
  %157 = vmatpush1.bf16.msra.mxu0 0
  %158 = vmatprep.subr.bf16.mxu0 0
  %159 = vmatpush1.bf16.msra.mxu0 0
  %160 = vmatprep.subr.bf16.mxu0 0
  %161 = vmatpush1.bf16.msra.mxu0 0
  %162 = vmatprep.subr.bf16.mxu0 0
  %163 = vmatpush1.bf16.msra.mxu0 %v121
  %164 = vmatprep.subr.bf16.mxu0 0
  %165 = vmatpush2.bf16.msra.mxu0 0
  %166 = vmatprep.subr.bf16.mxu0 0
  %167 = vmatpush2.bf16.msra.mxu0 0
  %168 = vmatprep.subr.bf16.mxu0 0
  %169 = vmatpush2.bf16.msra.mxu0 0
  %170 = vmatprep.subr.bf16.mxu0 0
  %171 = vmatpush2.bf16.msra.mxu0 0
  %172 = vmatprep.subr.bf16.mxu0 0
  %173 = vmatpush2.bf16.msra.mxu0 0
  %174 = vmatprep.subr.bf16.mxu0 0
  %175 = vmatpush2.bf16.msra.mxu0 0
  %176 = vmatprep.subr.bf16.mxu0 0
  %177 = vmatpush2.bf16.msra.mxu0 0
  %178 = vmatprep.subr.bf16.mxu0 0
  %179 = vmatpush2.bf16.msra.mxu0 0
  %180 = vmatprep.mubr.bf16.mxu0 0
  %181 = vmatmul.mubr.bf16.gmra.mxu0 %v125
  %v182 = vpop.f32.mrf.mxu0
  %v183 = vadd.f32 %v75, %v182
  %v184 = vpop.f32.mrf.mxu0
  %v185 = vpop.f32.mrf.mxu0
  %v186 = vadd.f32 %v75, %v185
  %v187 = vpop.f32.mrf.mxu0
  %188 = vmatprep.mubr.bf16.mxu0 0
  %189 = vmatmul.mubr.bf16.gmra.mxu0 %v128
  %v190 = vpop.f32.mrf.mxu0
  %v191 = vadd.f32 %v75, %v190
  %v192 = vpop.f32.mrf.mxu0
  %v193 = vpop.f32.mrf.mxu0
  %v194 = vadd.f32 %v75, %v193
  %v195 = vpop.f32.mrf.mxu0
  %196 = vmatprep.mubr.bf16.mxu0 0
  %197 = vmatmul.mubr.bf16.gmra.mxu0 %v131
  %v198 = vpop.f32.mrf.mxu0
  %v199 = vadd.f32 %v75, %v198
  %v200 = vpop.f32.mrf.mxu0
  %v201 = vpop.f32.mrf.mxu0
  %v202 = vadd.f32 %v75, %v201
  %v203 = vpop.f32.mrf.mxu0
  %204 = vmatprep.mubr.bf16.mxu0 0
  %205 = vmatmul.mubr.bf16.gmra.mxu0 %v134
  %v206 = vpop.f32.mrf.mxu0
  %v207 = vadd.f32 %v75, %v206
  %v208 = vpop.f32.mrf.mxu0
  %v209 = vpop.f32.mrf.mxu0
  %v210 = vadd.f32 %v75, %v209
  %v211 = vpop.f32.mrf.mxu0
  %212 = vmatprep.mubr.bf16.mxu0 0
  %213 = vmatmul.mubr.bf16.gmra.mxu0 %v137
  %v214 = vpop.f32.mrf.mxu0
  %v215 = vadd.f32 %v75, %v214
  %v216 = vpop.f32.mrf.mxu0
  %v217 = vpop.f32.mrf.mxu0
  %v218 = vadd.f32 %v75, %v217
  %v219 = vpop.f32.mrf.mxu0
  %220 = vmatprep.mubr.bf16.mxu0 0
  %221 = vmatmul.mubr.bf16.gmra.mxu0 %v140
  %v222 = vpop.f32.mrf.mxu0
  %v223 = vadd.f32 %v75, %v222
  %v224 = vpop.f32.mrf.mxu0
  %v225 = vpop.f32.mrf.mxu0
  %v226 = vadd.f32 %v75, %v225
  %v227 = vpop.f32.mrf.mxu0
  %228 = vmatprep.mubr.bf16.mxu0 0
  %229 = vmatmul.mubr.bf16.gmra.mxu0 %v143
  %v230 = vpop.f32.mrf.mxu0
  %v231 = vadd.f32 %v75, %v230
  %v232 = vpop.f32.mrf.mxu0
  %v233 = vpop.f32.mrf.mxu0
  %v234 = vadd.f32 %v75, %v233
  %v235 = vpop.f32.mrf.mxu0
  %236 = vmatprep.mubr.bf16.mxu0 0
  %237 = vmatmul.mubr.bf16.gmra.mxu0 %v146
  %v238 = vpop.f32.mrf.mxu0
  %v239 = vadd.f32 %v75, %v238
  %v240 = vpop.f32.mrf.mxu0
  %v241 = vpop.f32.mrf.mxu0
  %v242 = vadd.f32 %v75, %v241
  %v243 = vpop.f32.mrf.mxu0
  %244 = vdwg.mxu0
  %v245 = vld [vmem:[%s2] sm:$0xf]
  %v246 = vld [vmem:[%s3] sm:$0x1]
  %v248 = vlaneseq
  %v249 = vshrl.u32 %v248, 7
  %v250 = vsub.s32 0, %v249
  %v251 = vrot.slane %v246, %v250
  %v269 = vunpack.c.l.b16 %v36
  %v270 = vunpack.c.l.b16 %v37
  %v271 = vunpack.c.l.b16 %v38
  %v272 = vunpack.c.l.b16 %v39
  %v273 = vunpack.c.l.b16 %v40
  %v274 = vunpack.c.l.b16 %v41
  %v275 = vunpack.c.l.b16 %v42
  %v276 = vunpack.c.l.b16 %v43
  %v277 = vunpack.c.l.b16 %v44
  %v278 = vunpack.c.l.b16 %v45
  %v279 = vunpack.c.l.b16 %v46
  %v280 = vunpack.c.l.b16 %v47
  %v281 = vunpack.c.l.b16 %v48
  %v282 = vunpack.c.l.b16 %v49
  %v283 = vunpack.c.l.b16 %v50
  %v284 = vunpack.c.l.b16 %v51
  %v285 = vpack.c.b16 %v270, %v269
  %v286 = vpack.c.b16 %v272, %v271
  %v287 = vpack.c.b16 %v274, %v273
  %v288 = vpack.c.b16 %v276, %v275
  %v289 = vpack.c.b16 %v278, %v277
  %v290 = vpack.c.b16 %v280, %v279
  %v291 = vpack.c.b16 %v282, %v281
  %v292 = vpack.c.b16 %v284, %v283
  %vm293 = vcmask 64512
  %v295 = vsel %vm293, %v285, 0
  %v298 = vsel %vm293, %v286, 0
  %v301 = vsel %vm293, %v287, 0
  %v304 = vsel %vm293, %v288, 0
  %v307 = vsel %vm293, %v289, 0
  %v310 = vsel %vm293, %v290, 0
  %v313 = vsel %vm293, %v291, 0
  %v316 = vsel %vm293, %v292, 0
  %vm318 = vcmask 1043456
  %v320 = vsel %vm318, %v245, 0
  %322 = vmatprep.subr.bf16.mxu0 0
  %323 = vmatpush1.bf16.msra.mxu0 0
  %324 = vmatprep.subr.bf16.mxu0 0
  %325 = vmatpush1.bf16.msra.mxu0 0
  %326 = vmatprep.subr.bf16.mxu0 0
  %327 = vmatpush1.bf16.msra.mxu0 0
  %328 = vmatprep.subr.bf16.mxu0 0
  %329 = vmatpush1.bf16.msra.mxu0 0
  %330 = vmatprep.subr.bf16.mxu0 0
  %331 = vmatpush1.bf16.msra.mxu0 0
  %332 = vmatprep.subr.bf16.mxu0 0
  %333 = vmatpush1.bf16.msra.mxu0 0
  %334 = vmatprep.subr.bf16.mxu0 0
  %335 = vmatpush1.bf16.msra.mxu0 0
  %336 = vmatprep.subr.bf16.mxu0 0
  %337 = vmatpush1.bf16.msra.mxu0 %v320
  %338 = vmatprep.subr.bf16.mxu0 0
  %339 = vmatpush2.bf16.msra.mxu0 0
  %340 = vmatprep.subr.bf16.mxu0 0
  %341 = vmatpush2.bf16.msra.mxu0 0
  %342 = vmatprep.subr.bf16.mxu0 0
  %343 = vmatpush2.bf16.msra.mxu0 0
  %344 = vmatprep.subr.bf16.mxu0 0
  %345 = vmatpush2.bf16.msra.mxu0 0
  %346 = vmatprep.subr.bf16.mxu0 0
  %347 = vmatpush2.bf16.msra.mxu0 0
  %348 = vmatprep.subr.bf16.mxu0 0
  %349 = vmatpush2.bf16.msra.mxu0 0
  %350 = vmatprep.subr.bf16.mxu0 0
  %351 = vmatpush2.bf16.msra.mxu0 0
  %352 = vmatprep.subr.bf16.mxu0 0
  %353 = vmatpush2.bf16.msra.mxu0 0
  %354 = vmatprep.mubr.bf16.mxu0 0
  %355 = vmatmul.mubr.bf16.gmra.mxu0 %v295
  %v356 = vpop.f32.mrf.mxu0
  %v357 = vadd.f32 %v251, %v356
  %v358 = vpop.f32.mrf.mxu0
  %v359 = vpop.f32.mrf.mxu0
  %v360 = vadd.f32 %v251, %v359
  %v361 = vpop.f32.mrf.mxu0
  %362 = vmatprep.mubr.bf16.mxu0 0
  %363 = vmatmul.mubr.bf16.gmra.mxu0 %v298
  %v364 = vpop.f32.mrf.mxu0
  %v365 = vadd.f32 %v251, %v364
  %v366 = vpop.f32.mrf.mxu0
  %v367 = vpop.f32.mrf.mxu0
  %v368 = vadd.f32 %v251, %v367
  %v369 = vpop.f32.mrf.mxu0
  %370 = vmatprep.mubr.bf16.mxu0 0
  %371 = vmatmul.mubr.bf16.gmra.mxu0 %v301
  %v372 = vpop.f32.mrf.mxu0
  %v373 = vadd.f32 %v251, %v372
  %v374 = vpop.f32.mrf.mxu0
  %v375 = vpop.f32.mrf.mxu0
  %v376 = vadd.f32 %v251, %v375
  %v377 = vpop.f32.mrf.mxu0
  %378 = vmatprep.mubr.bf16.mxu0 0
  %379 = vmatmul.mubr.bf16.gmra.mxu0 %v304
  %v380 = vpop.f32.mrf.mxu0
  %v381 = vadd.f32 %v251, %v380
  %v382 = vpop.f32.mrf.mxu0
  %v383 = vpop.f32.mrf.mxu0
  %v384 = vadd.f32 %v251, %v383
  %v385 = vpop.f32.mrf.mxu0
  %386 = vmatprep.mubr.bf16.mxu0 0
  %387 = vmatmul.mubr.bf16.gmra.mxu0 %v307
  %v388 = vpop.f32.mrf.mxu0
  %v389 = vadd.f32 %v251, %v388
  %v390 = vpop.f32.mrf.mxu0
  %v391 = vpop.f32.mrf.mxu0
  %v392 = vadd.f32 %v251, %v391
  %v393 = vpop.f32.mrf.mxu0
  %394 = vmatprep.mubr.bf16.mxu0 0
  %395 = vmatmul.mubr.bf16.gmra.mxu0 %v310
  %v396 = vpop.f32.mrf.mxu0
  %v397 = vadd.f32 %v251, %v396
  %v398 = vpop.f32.mrf.mxu0
  %v399 = vpop.f32.mrf.mxu0
  %v400 = vadd.f32 %v251, %v399
  %v401 = vpop.f32.mrf.mxu0
  %402 = vmatprep.mubr.bf16.mxu0 0
  %403 = vmatmul.mubr.bf16.gmra.mxu0 %v313
  %v404 = vpop.f32.mrf.mxu0
  %v405 = vadd.f32 %v251, %v404
  %v406 = vpop.f32.mrf.mxu0
  %v407 = vpop.f32.mrf.mxu0
  %v408 = vadd.f32 %v251, %v407
  %v409 = vpop.f32.mrf.mxu0
  %410 = vmatprep.mubr.bf16.mxu0 0
  %411 = vmatmul.mubr.bf16.gmra.mxu0 %v316
  %v412 = vpop.f32.mrf.mxu0
  %v413 = vadd.f32 %v251, %v412
  %v414 = vpop.f32.mrf.mxu0
  %v415 = vpop.f32.mrf.mxu0
  %v416 = vadd.f32 %v251, %v415
  %v417 = vpop.f32.mrf.mxu0
  %418 = vdwg.mxu0
  %v419 = vadd.f32 %v357, %v183
  %v420 = vadd.f32 %v360, %v186
  %v421 = vadd.f32 %v365, %v191
  %v422 = vadd.f32 %v368, %v194
  %v423 = vadd.f32 %v373, %v199
  %v424 = vadd.f32 %v376, %v202
  %v425 = vadd.f32 %v381, %v207
  %v426 = vadd.f32 %v384, %v210
  %v427 = vadd.f32 %v389, %v215
  %v428 = vadd.f32 %v392, %v218
  %v429 = vadd.f32 %v397, %v223
  %v430 = vadd.f32 %v400, %v226
  %v431 = vadd.f32 %v405, %v231
  %v432 = vadd.f32 %v408, %v234
  %v433 = vadd.f32 %v413, %v239
  %v434 = vadd.f32 %v416, %v242
  %v435 = vpack.c.bf16 %v420, %v419
  %v436 = vpack.c.bf16 %v422, %v421
  %v437 = vpack.c.bf16 %v424, %v423
  %v438 = vpack.c.bf16 %v426, %v425
  %v439 = vpack.c.bf16 %v428, %v427
  %v440 = vpack.c.bf16 %v430, %v429
  %v441 = vpack.c.bf16 %v432, %v431
  %v442 = vpack.c.bf16 %v434, %v433
  %v443 = vld [vmem:[%s6] sm:$0xf]
  %v444 = vld [vmem:[%s6 + $0x4] sm:$0xf]
  %v445 = vld [vmem:[%s6 + $0x8] sm:$0xf]
  %v446 = vld [vmem:[%s6 + $0xc] sm:$0xf]
  %v447 = vld [vmem:[%s7] sm:$0x1]
  %v449 = vlaneseq
  %v450 = vshrl.u32 %v449, 7
  %v451 = vsub.s32 0, %v450
  %v452 = vrot.slane %v447, %v451
  %v458 = vunpack.c.l.b16 %v443
  %v459 = vunpack.c.l.b16 %v444
  %v460 = vunpack.c.l.b16 %v445
  %v461 = vunpack.c.l.b16 %v446
  %v462 = vpack.c.b16 %v459, %v458
  %v463 = vpack.c.b16 %v461, %v460
  %vm466 = vcmask 261120
  %v468 = vsel %vm466, %v435, 0
  %v471 = vsel %vm466, %v436, 0
  %v474 = vsel %vm466, %v437, 0
  %v477 = vsel %vm466, %v438, 0
  %v480 = vsel %vm466, %v439, 0
  %v483 = vsel %vm466, %v440, 0
  %v486 = vsel %vm466, %v441, 0
  %v489 = vsel %vm466, %v442, 0
  %491 = vmatprep.subr.bf16.mxu0 0
  %492 = vmatpush1.bf16.msra.mxu0 0
  %493 = vmatprep.subr.bf16.mxu0 0
  %494 = vmatpush1.bf16.msra.mxu0 0
  %495 = vmatprep.subr.bf16.mxu0 0
  %496 = vmatpush1.bf16.msra.mxu0 0
  %497 = vmatprep.subr.bf16.mxu0 0
  %498 = vmatpush1.bf16.msra.mxu0 0
  %499 = vmatprep.subr.bf16.mxu0 0
  %500 = vmatpush1.bf16.msra.mxu0 0
  %501 = vmatprep.subr.bf16.mxu0 0
  %502 = vmatpush1.bf16.msra.mxu0 0
  %503 = vmatprep.subr.bf16.mxu0 0
  %504 = vmatpush1.bf16.msra.mxu0 %v463
  %505 = vmatprep.subr.bf16.mxu0 0
  %506 = vmatpush1.bf16.msra.mxu0 %v462
  %507 = vmatprep.subr.bf16.mxu0 0
  %508 = vmatpush2.bf16.msra.mxu0 0
  %509 = vmatprep.subr.bf16.mxu0 0
  %510 = vmatpush2.bf16.msra.mxu0 0
  %511 = vmatprep.subr.bf16.mxu0 0
  %512 = vmatpush2.bf16.msra.mxu0 0
  %513 = vmatprep.subr.bf16.mxu0 0
  %514 = vmatpush2.bf16.msra.mxu0 0
  %515 = vmatprep.subr.bf16.mxu0 0
  %516 = vmatpush2.bf16.msra.mxu0 0
  %517 = vmatprep.subr.bf16.mxu0 0
  %518 = vmatpush2.bf16.msra.mxu0 0
  %519 = vmatprep.subr.bf16.mxu0 0
  %520 = vmatpush2.bf16.msra.mxu0 0
  %521 = vmatprep.subr.bf16.mxu0 0
  %522 = vmatpush2.bf16.msra.mxu0 0
  %523 = vmatprep.mubr.bf16.mxu0 0
  %524 = vmatmul.mubr.bf16.gmra.mxu0 %v468
  %v525 = vpop.f32.mrf.mxu0
  %v526 = vadd.f32 %v452, %v525
  %v527 = vpop.f32.mrf.mxu0
  %v528 = vpop.f32.mrf.mxu0
  %v529 = vadd.f32 %v452, %v528
  %v530 = vpop.f32.mrf.mxu0
  %531 = vmatprep.mubr.bf16.mxu0 0
  %532 = vmatmul.mubr.bf16.gmra.mxu0 %v471
  %v533 = vpop.f32.mrf.mxu0
  %v534 = vadd.f32 %v452, %v533
  %v535 = vpop.f32.mrf.mxu0
  %v536 = vpop.f32.mrf.mxu0
  %v537 = vadd.f32 %v452, %v536
  %v538 = vpop.f32.mrf.mxu0
  %539 = vmatprep.mubr.bf16.mxu0 0
  %540 = vmatmul.mubr.bf16.gmra.mxu0 %v474
  %v541 = vpop.f32.mrf.mxu0
  %v542 = vadd.f32 %v452, %v541
  %v543 = vpop.f32.mrf.mxu0
  %v544 = vpop.f32.mrf.mxu0
  %v545 = vadd.f32 %v452, %v544
  %v546 = vpop.f32.mrf.mxu0
  %547 = vmatprep.mubr.bf16.mxu0 0
  %548 = vmatmul.mubr.bf16.gmra.mxu0 %v477
  %v549 = vpop.f32.mrf.mxu0
  %v550 = vadd.f32 %v452, %v549
  %v551 = vpop.f32.mrf.mxu0
  %v552 = vpop.f32.mrf.mxu0
  %v553 = vadd.f32 %v452, %v552
  %v554 = vpop.f32.mrf.mxu0
  %555 = vmatprep.mubr.bf16.mxu0 0
  %556 = vmatmul.mubr.bf16.gmra.mxu0 %v480
  %v557 = vpop.f32.mrf.mxu0
  %v558 = vadd.f32 %v452, %v557
  %v559 = vpop.f32.mrf.mxu0
  %v560 = vpop.f32.mrf.mxu0
  %v561 = vadd.f32 %v452, %v560
  %v562 = vpop.f32.mrf.mxu0
  %563 = vmatprep.mubr.bf16.mxu0 0
  %564 = vmatmul.mubr.bf16.gmra.mxu0 %v483
  %v565 = vpop.f32.mrf.mxu0
  %v566 = vadd.f32 %v452, %v565
  %v567 = vpop.f32.mrf.mxu0
  %v568 = vpop.f32.mrf.mxu0
  %v569 = vadd.f32 %v452, %v568
  %v570 = vpop.f32.mrf.mxu0
  %571 = vmatprep.mubr.bf16.mxu0 0
  %572 = vmatmul.mubr.bf16.gmra.mxu0 %v486
  %v573 = vpop.f32.mrf.mxu0
  %v574 = vadd.f32 %v452, %v573
  %v575 = vpop.f32.mrf.mxu0
  %v576 = vpop.f32.mrf.mxu0
  %v577 = vadd.f32 %v452, %v576
  %v578 = vpop.f32.mrf.mxu0
  %579 = vmatprep.mubr.bf16.mxu0 0
  %580 = vmatmul.mubr.bf16.gmra.mxu0 %v489
  %v581 = vpop.f32.mrf.mxu0
  %v582 = vadd.f32 %v452, %v581
  %v583 = vpop.f32.mrf.mxu0
  %v584 = vpop.f32.mrf.mxu0
  %v585 = vadd.f32 %v452, %v584
  %v586 = vpop.f32.mrf.mxu0
  %587 = vdwg.mxu0
  %v588 = vmax.f32 %v526, 0.0
  %v589 = vmax.f32 %v529, 0.0
  %v590 = vmax.f32 %v534, 0.0
  %v591 = vmax.f32 %v537, 0.0
  %v592 = vmax.f32 %v542, 0.0
  %v593 = vmax.f32 %v545, 0.0
  %v594 = vmax.f32 %v550, 0.0
  %v595 = vmax.f32 %v553, 0.0
  %v596 = vmax.f32 %v558, 0.0
  %v597 = vmax.f32 %v561, 0.0
  %v598 = vmax.f32 %v566, 0.0
  %v599 = vmax.f32 %v569, 0.0
  %v600 = vmax.f32 %v574, 0.0
  %v601 = vmax.f32 %v577, 0.0
  %v602 = vmax.f32 %v582, 0.0
  %v603 = vmax.f32 %v585, 0.0
  %v604 = vadd.f32 %v419, %v588
  %v605 = vadd.f32 %v420, %v589
  %v606 = vadd.f32 %v421, %v590
  %v607 = vadd.f32 %v422, %v591
  %v608 = vadd.f32 %v423, %v592
  %v609 = vadd.f32 %v424, %v593
  %v610 = vadd.f32 %v425, %v594
  %v611 = vadd.f32 %v426, %v595
  %v612 = vadd.f32 %v427, %v596
  %v613 = vadd.f32 %v428, %v597
  %v614 = vadd.f32 %v429, %v598
  %v615 = vadd.f32 %v430, %v599
  %v616 = vadd.f32 %v431, %v600
  %v617 = vadd.f32 %v432, %v601
  %v618 = vadd.f32 %v433, %v602
  %v619 = vadd.f32 %v434, %v603
  %v620 = vmax.f32 %v604, 0.0
  %v621 = vmax.f32 %v605, 0.0
  %v622 = vmax.f32 %v606, 0.0
  %v623 = vmax.f32 %v607, 0.0
  %v624 = vmax.f32 %v608, 0.0
  %v625 = vmax.f32 %v609, 0.0
  %v626 = vmax.f32 %v610, 0.0
  %v627 = vmax.f32 %v611, 0.0
  %v628 = vmax.f32 %v612, 0.0
  %v629 = vmax.f32 %v613, 0.0
  %v630 = vmax.f32 %v614, 0.0
  %v631 = vmax.f32 %v615, 0.0
  %v632 = vmax.f32 %v616, 0.0
  %v633 = vmax.f32 %v617, 0.0
  %v634 = vmax.f32 %v618, 0.0
  %v635 = vmax.f32 %v619, 0.0
  %v636 = vadd.f32 %v620, %v183
  %v637 = vadd.f32 %v621, %v186
  %v638 = vadd.f32 %v622, %v191
  %v639 = vadd.f32 %v623, %v194
  %v640 = vadd.f32 %v624, %v199
  %v641 = vadd.f32 %v625, %v202
  %v642 = vadd.f32 %v626, %v207
  %v643 = vadd.f32 %v627, %v210
  %v644 = vadd.f32 %v628, %v215
  %v645 = vadd.f32 %v629, %v218
  %v646 = vadd.f32 %v630, %v223
  %v647 = vadd.f32 %v631, %v226
  %v648 = vadd.f32 %v632, %v231
  %v649 = vadd.f32 %v633, %v234
  %v650 = vadd.f32 %v634, %v239
  %v651 = vadd.f32 %v635, %v242
  %v652 = vpack.c.bf16 %v637, %v636
  %v653 = vpack.c.bf16 %v639, %v638
  %v654 = vpack.c.bf16 %v641, %v640
  %v655 = vpack.c.bf16 %v643, %v642
  %v656 = vpack.c.bf16 %v645, %v644
  %v657 = vpack.c.bf16 %v647, %v646
  %v658 = vpack.c.bf16 %v649, %v648
  %v659 = vpack.c.bf16 %v651, %v650
  %s660 = scalar_lea.vmem %s6, 16
  %v661 = vld [vmem:[%s660] sm:$0xf]
  %v662 = vld [vmem:[%s660 + $0x4] sm:$0xf]
  %v663 = vld [vmem:[%s660 + $0x8] sm:$0xf]
  %v664 = vld [vmem:[%s660 + $0xc] sm:$0xf]
  %s665 = scalar_lea.vmem %s7, 1
  %v666 = vld [vmem:[%s665] sm:$0x1]
  %v668 = vlaneseq
  %v669 = vshrl.u32 %v668, 7
  %v670 = vsub.s32 0, %v669
  %v671 = vrot.slane %v666, %v670
  %v677 = vunpack.c.l.b16 %v661
  %v678 = vunpack.c.l.b16 %v662
  %v679 = vunpack.c.l.b16 %v663
  %v680 = vunpack.c.l.b16 %v664
  %v681 = vpack.c.b16 %v678, %v677
  %v682 = vpack.c.b16 %v680, %v679
  %v686 = vsel %vm466, %v652, 0
  %v689 = vsel %vm466, %v653, 0
  %v692 = vsel %vm466, %v654, 0
  %v695 = vsel %vm466, %v655, 0
  %v698 = vsel %vm466, %v656, 0
  %v701 = vsel %vm466, %v657, 0
  %v704 = vsel %vm466, %v658, 0
  %v707 = vsel %vm466, %v659, 0
  %709 = vmatprep.subr.bf16.mxu0 0
  %710 = vmatpush1.bf16.msra.mxu0 0
  %711 = vmatprep.subr.bf16.mxu0 0
  %712 = vmatpush1.bf16.msra.mxu0 0
  %713 = vmatprep.subr.bf16.mxu0 0
  %714 = vmatpush1.bf16.msra.mxu0 0
  %715 = vmatprep.subr.bf16.mxu0 0
  %716 = vmatpush1.bf16.msra.mxu0 0
  %717 = vmatprep.subr.bf16.mxu0 0
  %718 = vmatpush1.bf16.msra.mxu0 0
  %719 = vmatprep.subr.bf16.mxu0 0
  %720 = vmatpush1.bf16.msra.mxu0 0
  %721 = vmatprep.subr.bf16.mxu0 0
  %722 = vmatpush1.bf16.msra.mxu0 %v682
  %723 = vmatprep.subr.bf16.mxu0 0
  %724 = vmatpush1.bf16.msra.mxu0 %v681
  %725 = vmatprep.subr.bf16.mxu0 0
  %726 = vmatpush2.bf16.msra.mxu0 0
  %727 = vmatprep.subr.bf16.mxu0 0
  %728 = vmatpush2.bf16.msra.mxu0 0
  %729 = vmatprep.subr.bf16.mxu0 0
  %730 = vmatpush2.bf16.msra.mxu0 0
  %731 = vmatprep.subr.bf16.mxu0 0
  %732 = vmatpush2.bf16.msra.mxu0 0
  %733 = vmatprep.subr.bf16.mxu0 0
  %734 = vmatpush2.bf16.msra.mxu0 0
  %735 = vmatprep.subr.bf16.mxu0 0
  %736 = vmatpush2.bf16.msra.mxu0 0
  %737 = vmatprep.subr.bf16.mxu0 0
  %738 = vmatpush2.bf16.msra.mxu0 0
  %739 = vmatprep.subr.bf16.mxu0 0
  %740 = vmatpush2.bf16.msra.mxu0 0
  %741 = vmatprep.mubr.bf16.mxu0 0
  %742 = vmatmul.mubr.bf16.gmra.mxu0 %v686
  %v743 = vpop.f32.mrf.mxu0
  %v744 = vadd.f32 %v671, %v743
  %v745 = vpop.f32.mrf.mxu0
  %v746 = vpop.f32.mrf.mxu0
  %v747 = vadd.f32 %v671, %v746
  %v748 = vpop.f32.mrf.mxu0
  %749 = vmatprep.mubr.bf16.mxu0 0
  %750 = vmatmul.mubr.bf16.gmra.mxu0 %v689
  %v751 = vpop.f32.mrf.mxu0
  %v752 = vadd.f32 %v671, %v751
  %v753 = vpop.f32.mrf.mxu0
  %v754 = vpop.f32.mrf.mxu0
  %v755 = vadd.f32 %v671, %v754
  %v756 = vpop.f32.mrf.mxu0
  %757 = vmatprep.mubr.bf16.mxu0 0
  %758 = vmatmul.mubr.bf16.gmra.mxu0 %v692
  %v759 = vpop.f32.mrf.mxu0
  %v760 = vadd.f32 %v671, %v759
  %v761 = vpop.f32.mrf.mxu0
  %v762 = vpop.f32.mrf.mxu0
  %v763 = vadd.f32 %v671, %v762
  %v764 = vpop.f32.mrf.mxu0
  %765 = vmatprep.mubr.bf16.mxu0 0
  %766 = vmatmul.mubr.bf16.gmra.mxu0 %v695
  %v767 = vpop.f32.mrf.mxu0
  %v768 = vadd.f32 %v671, %v767
  %v769 = vpop.f32.mrf.mxu0
  %v770 = vpop.f32.mrf.mxu0
  %v771 = vadd.f32 %v671, %v770
  %v772 = vpop.f32.mrf.mxu0
  %773 = vmatprep.mubr.bf16.mxu0 0
  %774 = vmatmul.mubr.bf16.gmra.mxu0 %v698
  %v775 = vpop.f32.mrf.mxu0
  %v776 = vadd.f32 %v671, %v775
  %v777 = vpop.f32.mrf.mxu0
  %v778 = vpop.f32.mrf.mxu0
  %v779 = vadd.f32 %v671, %v778
  %v780 = vpop.f32.mrf.mxu0
  %781 = vmatprep.mubr.bf16.mxu0 0
  %782 = vmatmul.mubr.bf16.gmra.mxu0 %v701
  %v783 = vpop.f32.mrf.mxu0
  %v784 = vadd.f32 %v671, %v783
  %v785 = vpop.f32.mrf.mxu0
  %v786 = vpop.f32.mrf.mxu0
  %v787 = vadd.f32 %v671, %v786
  %v788 = vpop.f32.mrf.mxu0
  %789 = vmatprep.mubr.bf16.mxu0 0
  %790 = vmatmul.mubr.bf16.gmra.mxu0 %v704
  %v791 = vpop.f32.mrf.mxu0
  %v792 = vadd.f32 %v671, %v791
  %v793 = vpop.f32.mrf.mxu0
  %v794 = vpop.f32.mrf.mxu0
  %v795 = vadd.f32 %v671, %v794
  %v796 = vpop.f32.mrf.mxu0
  %797 = vmatprep.mubr.bf16.mxu0 0
  %798 = vmatmul.mubr.bf16.gmra.mxu0 %v707
  %v799 = vpop.f32.mrf.mxu0
  %v800 = vadd.f32 %v671, %v799
  %v801 = vpop.f32.mrf.mxu0
  %v802 = vpop.f32.mrf.mxu0
  %v803 = vadd.f32 %v671, %v802
  %v804 = vpop.f32.mrf.mxu0
  %805 = vdwg.mxu0
  %v806 = vmax.f32 %v744, 0.0
  %v807 = vmax.f32 %v747, 0.0
  %v808 = vmax.f32 %v752, 0.0
  %v809 = vmax.f32 %v755, 0.0
  %v810 = vmax.f32 %v760, 0.0
  %v811 = vmax.f32 %v763, 0.0
  %v812 = vmax.f32 %v768, 0.0
  %v813 = vmax.f32 %v771, 0.0
  %v814 = vmax.f32 %v776, 0.0
  %v815 = vmax.f32 %v779, 0.0
  %v816 = vmax.f32 %v784, 0.0
  %v817 = vmax.f32 %v787, 0.0
  %v818 = vmax.f32 %v792, 0.0
  %v819 = vmax.f32 %v795, 0.0
  %v820 = vmax.f32 %v800, 0.0
  %v821 = vmax.f32 %v803, 0.0
  %v822 = vadd.f32 %v620, %v806
  %v823 = vadd.f32 %v621, %v807
  %v824 = vadd.f32 %v622, %v808
  %v825 = vadd.f32 %v623, %v809
  %v826 = vadd.f32 %v624, %v810
  %v827 = vadd.f32 %v625, %v811
  %v828 = vadd.f32 %v626, %v812
  %v829 = vadd.f32 %v627, %v813
  %v830 = vadd.f32 %v628, %v814
  %v831 = vadd.f32 %v629, %v815
  %v832 = vadd.f32 %v630, %v816
  %v833 = vadd.f32 %v631, %v817
  %v834 = vadd.f32 %v632, %v818
  %v835 = vadd.f32 %v633, %v819
  %v836 = vadd.f32 %v634, %v820
  %v837 = vadd.f32 %v635, %v821
  %v838 = vmax.f32 %v822, 0.0
  %v839 = vmax.f32 %v823, 0.0
  %v840 = vmax.f32 %v824, 0.0
  %v841 = vmax.f32 %v825, 0.0
  %v842 = vmax.f32 %v826, 0.0
  %v843 = vmax.f32 %v827, 0.0
  %v844 = vmax.f32 %v828, 0.0
  %v845 = vmax.f32 %v829, 0.0
  %v846 = vmax.f32 %v830, 0.0
  %v847 = vmax.f32 %v831, 0.0
  %v848 = vmax.f32 %v832, 0.0
  %v849 = vmax.f32 %v833, 0.0
  %v850 = vmax.f32 %v834, 0.0
  %v851 = vmax.f32 %v835, 0.0
  %v852 = vmax.f32 %v836, 0.0
  %v853 = vmax.f32 %v837, 0.0
  %v854 = vadd.f32 %v838, %v183
  %v855 = vadd.f32 %v839, %v186
  %v856 = vadd.f32 %v840, %v191
  %v857 = vadd.f32 %v841, %v194
  %v858 = vadd.f32 %v842, %v199
  %v859 = vadd.f32 %v843, %v202
  %v860 = vadd.f32 %v844, %v207
  %v861 = vadd.f32 %v845, %v210
  %v862 = vadd.f32 %v846, %v215
  %v863 = vadd.f32 %v847, %v218
  %v864 = vadd.f32 %v848, %v223
  %v865 = vadd.f32 %v849, %v226
  %v866 = vadd.f32 %v850, %v231
  %v867 = vadd.f32 %v851, %v234
  %v868 = vadd.f32 %v852, %v239
  %v869 = vadd.f32 %v853, %v242
  %v870 = vpack.c.bf16 %v855, %v854
  %v871 = vpack.c.bf16 %v857, %v856
  %v872 = vpack.c.bf16 %v859, %v858
  %v873 = vpack.c.bf16 %v861, %v860
  %v874 = vpack.c.bf16 %v863, %v862
  %v875 = vpack.c.bf16 %v865, %v864
  %v876 = vpack.c.bf16 %v867, %v866
  %v877 = vpack.c.bf16 %v869, %v868
  %s878 = scalar_lea.vmem %s6, 32
  %v879 = vld [vmem:[%s878] sm:$0xf]
  %v880 = vld [vmem:[%s878 + $0x4] sm:$0xf]
  %v881 = vld [vmem:[%s878 + $0x8] sm:$0xf]
  %v882 = vld [vmem:[%s878 + $0xc] sm:$0xf]
  %s883 = scalar_lea.vmem %s7, 2
  %v884 = vld [vmem:[%s883] sm:$0x1]
  %v886 = vlaneseq
  %v887 = vshrl.u32 %v886, 7
  %v888 = vsub.s32 0, %v887
  %v889 = vrot.slane %v884, %v888
  %v895 = vunpack.c.l.b16 %v879
  %v896 = vunpack.c.l.b16 %v880
  %v897 = vunpack.c.l.b16 %v881
  %v898 = vunpack.c.l.b16 %v882
  %v899 = vpack.c.b16 %v896, %v895
  %v900 = vpack.c.b16 %v898, %v897
  %v904 = vsel %vm466, %v870, 0
  %v907 = vsel %vm466, %v871, 0
  %v910 = vsel %vm466, %v872, 0
  %v913 = vsel %vm466, %v873, 0
  %v916 = vsel %vm466, %v874, 0
  %v919 = vsel %vm466, %v875, 0
  %v922 = vsel %vm466, %v876, 0
  %v925 = vsel %vm466, %v877, 0
  %927 = vmatprep.subr.bf16.mxu0 0
  %928 = vmatpush1.bf16.msra.mxu0 0
  %929 = vmatprep.subr.bf16.mxu0 0
  %930 = vmatpush1.bf16.msra.mxu0 0
  %931 = vmatprep.subr.bf16.mxu0 0
  %932 = vmatpush1.bf16.msra.mxu0 0
  %933 = vmatprep.subr.bf16.mxu0 0
  %934 = vmatpush1.bf16.msra.mxu0 0
  %935 = vmatprep.subr.bf16.mxu0 0
  %936 = vmatpush1.bf16.msra.mxu0 0
  %937 = vmatprep.subr.bf16.mxu0 0
  %938 = vmatpush1.bf16.msra.mxu0 0
  %939 = vmatprep.subr.bf16.mxu0 0
  %940 = vmatpush1.bf16.msra.mxu0 %v900
  %941 = vmatprep.subr.bf16.mxu0 0
  %942 = vmatpush1.bf16.msra.mxu0 %v899
  %943 = vmatprep.subr.bf16.mxu0 0
  %944 = vmatpush2.bf16.msra.mxu0 0
  %945 = vmatprep.subr.bf16.mxu0 0
  %946 = vmatpush2.bf16.msra.mxu0 0
  %947 = vmatprep.subr.bf16.mxu0 0
  %948 = vmatpush2.bf16.msra.mxu0 0
  %949 = vmatprep.subr.bf16.mxu0 0
  %950 = vmatpush2.bf16.msra.mxu0 0
  %951 = vmatprep.subr.bf16.mxu0 0
  %952 = vmatpush2.bf16.msra.mxu0 0
  %953 = vmatprep.subr.bf16.mxu0 0
  %954 = vmatpush2.bf16.msra.mxu0 0
  %955 = vmatprep.subr.bf16.mxu0 0
  %956 = vmatpush2.bf16.msra.mxu0 0
  %957 = vmatprep.subr.bf16.mxu0 0
  %958 = vmatpush2.bf16.msra.mxu0 0
  %959 = vmatprep.mubr.bf16.mxu0 0
  %960 = vmatmul.mubr.bf16.gmra.mxu0 %v904
  %v961 = vpop.f32.mrf.mxu0
  %v962 = vadd.f32 %v889, %v961
  %v963 = vpop.f32.mrf.mxu0
  %v964 = vpop.f32.mrf.mxu0
  %v965 = vadd.f32 %v889, %v964
  %v966 = vpop.f32.mrf.mxu0
  %967 = vmatprep.mubr.bf16.mxu0 0
  %968 = vmatmul.mubr.bf16.gmra.mxu0 %v907
  %v969 = vpop.f32.mrf.mxu0
  %v970 = vadd.f32 %v889, %v969
  %v971 = vpop.f32.mrf.mxu0
  %v972 = vpop.f32.mrf.mxu0
  %v973 = vadd.f32 %v889, %v972
  %v974 = vpop.f32.mrf.mxu0
  %975 = vmatprep.mubr.bf16.mxu0 0
  %976 = vmatmul.mubr.bf16.gmra.mxu0 %v910
  %v977 = vpop.f32.mrf.mxu0
  %v978 = vadd.f32 %v889, %v977
  %v979 = vpop.f32.mrf.mxu0
  %v980 = vpop.f32.mrf.mxu0
  %v981 = vadd.f32 %v889, %v980
  %v982 = vpop.f32.mrf.mxu0
  %983 = vmatprep.mubr.bf16.mxu0 0
  %984 = vmatmul.mubr.bf16.gmra.mxu0 %v913
  %v985 = vpop.f32.mrf.mxu0
  %v986 = vadd.f32 %v889, %v985
  %v987 = vpop.f32.mrf.mxu0
  %v988 = vpop.f32.mrf.mxu0
  %v989 = vadd.f32 %v889, %v988
  %v990 = vpop.f32.mrf.mxu0
  %991 = vmatprep.mubr.bf16.mxu0 0
  %992 = vmatmul.mubr.bf16.gmra.mxu0 %v916
  %v993 = vpop.f32.mrf.mxu0
  %v994 = vadd.f32 %v889, %v993
  %v995 = vpop.f32.mrf.mxu0
  %v996 = vpop.f32.mrf.mxu0
  %v997 = vadd.f32 %v889, %v996
  %v998 = vpop.f32.mrf.mxu0
  %999 = vmatprep.mubr.bf16.mxu0 0
  %1000 = vmatmul.mubr.bf16.gmra.mxu0 %v919
  %v1001 = vpop.f32.mrf.mxu0
  %v1002 = vadd.f32 %v889, %v1001
  %v1003 = vpop.f32.mrf.mxu0
  %v1004 = vpop.f32.mrf.mxu0
  %v1005 = vadd.f32 %v889, %v1004
  %v1006 = vpop.f32.mrf.mxu0
  %1007 = vmatprep.mubr.bf16.mxu0 0
  %1008 = vmatmul.mubr.bf16.gmra.mxu0 %v922
  %v1009 = vpop.f32.mrf.mxu0
  %v1010 = vadd.f32 %v889, %v1009
  %v1011 = vpop.f32.mrf.mxu0
  %v1012 = vpop.f32.mrf.mxu0
  %v1013 = vadd.f32 %v889, %v1012
  %v1014 = vpop.f32.mrf.mxu0
  %1015 = vmatprep.mubr.bf16.mxu0 0
  %1016 = vmatmul.mubr.bf16.gmra.mxu0 %v925
  %v1017 = vpop.f32.mrf.mxu0
  %v1018 = vadd.f32 %v889, %v1017
  %v1019 = vpop.f32.mrf.mxu0
  %v1020 = vpop.f32.mrf.mxu0
  %v1021 = vadd.f32 %v889, %v1020
  %v1022 = vpop.f32.mrf.mxu0
  %1023 = vdwg.mxu0
  %v1024 = vmax.f32 %v962, 0.0
  %v1025 = vmax.f32 %v965, 0.0
  %v1026 = vmax.f32 %v970, 0.0
  %v1027 = vmax.f32 %v973, 0.0
  %v1028 = vmax.f32 %v978, 0.0
  %v1029 = vmax.f32 %v981, 0.0
  %v1030 = vmax.f32 %v986, 0.0
  %v1031 = vmax.f32 %v989, 0.0
  %v1032 = vmax.f32 %v994, 0.0
  %v1033 = vmax.f32 %v997, 0.0
  %v1034 = vmax.f32 %v1002, 0.0
  %v1035 = vmax.f32 %v1005, 0.0
  %v1036 = vmax.f32 %v1010, 0.0
  %v1037 = vmax.f32 %v1013, 0.0
  %v1038 = vmax.f32 %v1018, 0.0
  %v1039 = vmax.f32 %v1021, 0.0
  %v1040 = vadd.f32 %v838, %v1024
  %v1041 = vadd.f32 %v839, %v1025
  %v1042 = vadd.f32 %v840, %v1026
  %v1043 = vadd.f32 %v841, %v1027
  %v1044 = vadd.f32 %v842, %v1028
  %v1045 = vadd.f32 %v843, %v1029
  %v1046 = vadd.f32 %v844, %v1030
  %v1047 = vadd.f32 %v845, %v1031
  %v1048 = vadd.f32 %v846, %v1032
  %v1049 = vadd.f32 %v847, %v1033
  %v1050 = vadd.f32 %v848, %v1034
  %v1051 = vadd.f32 %v849, %v1035
  %v1052 = vadd.f32 %v850, %v1036
  %v1053 = vadd.f32 %v851, %v1037
  %v1054 = vadd.f32 %v852, %v1038
  %v1055 = vadd.f32 %v853, %v1039
  %v1056 = vmax.f32 %v1040, 0.0
  %v1057 = vmax.f32 %v1041, 0.0
  %v1058 = vmax.f32 %v1042, 0.0
  %v1059 = vmax.f32 %v1043, 0.0
  %v1060 = vmax.f32 %v1044, 0.0
  %v1061 = vmax.f32 %v1045, 0.0
  %v1062 = vmax.f32 %v1046, 0.0
  %v1063 = vmax.f32 %v1047, 0.0
  %v1064 = vmax.f32 %v1048, 0.0
  %v1065 = vmax.f32 %v1049, 0.0
  %v1066 = vmax.f32 %v1050, 0.0
  %v1067 = vmax.f32 %v1051, 0.0
  %v1068 = vmax.f32 %v1052, 0.0
  %v1069 = vmax.f32 %v1053, 0.0
  %v1070 = vmax.f32 %v1054, 0.0
  %v1071 = vmax.f32 %v1055, 0.0
  %v1072 = vpack.c.bf16 %v1057, %v1056
  %v1073 = vpack.c.bf16 %v1059, %v1058
  %v1074 = vpack.c.bf16 %v1061, %v1060
  %v1075 = vpack.c.bf16 %v1063, %v1062
  %v1076 = vpack.c.bf16 %v1065, %v1064
  %v1077 = vpack.c.bf16 %v1067, %v1066
  %v1078 = vpack.c.bf16 %v1069, %v1068
  %v1079 = vpack.c.bf16 %v1071, %v1070
  %v1080 = vld [vmem:[%s8] sm:$0xf]
  %v1081 = vld [vmem:[%s8 + $0x4] sm:$0xf]
  %v1082 = vld [vmem:[%s8 + $0x8] sm:$0xf]
  %v1083 = vld [vmem:[%s8 + $0xc] sm:$0xf]
  %v1084 = vld [vmem:[%s9] sm:$0x1]
  %v1086 = vlaneseq
  %v1087 = vshrl.u32 %v1086, 7
  %v1088 = vsub.s32 0, %v1087
  %v1089 = vrot.slane %v1084, %v1088
  %v1095 = vunpack.c.l.b16 %v1080
  %v1096 = vunpack.c.l.b16 %v1081
  %v1097 = vunpack.c.l.b16 %v1082
  %v1098 = vunpack.c.l.b16 %v1083
  %v1099 = vpack.c.b16 %v1096, %v1095
  %v1100 = vpack.c.b16 %v1098, %v1097
  %v1104 = vsel %vm466, %v1072, 0
  %v1107 = vsel %vm466, %v1073, 0
  %v1110 = vsel %vm466, %v1074, 0
  %v1113 = vsel %vm466, %v1075, 0
  %v1116 = vsel %vm466, %v1076, 0
  %v1119 = vsel %vm466, %v1077, 0
  %v1122 = vsel %vm466, %v1078, 0
  %v1125 = vsel %vm466, %v1079, 0
  %1127 = vmatprep.subr.bf16.mxu0 0
  %1128 = vmatpush1.bf16.msra.mxu0 0
  %1129 = vmatprep.subr.bf16.mxu0 0
  %1130 = vmatpush1.bf16.msra.mxu0 0
  %1131 = vmatprep.subr.bf16.mxu0 0
  %1132 = vmatpush1.bf16.msra.mxu0 0
  %1133 = vmatprep.subr.bf16.mxu0 0
  %1134 = vmatpush1.bf16.msra.mxu0 0
  %1135 = vmatprep.subr.bf16.mxu0 0
  %1136 = vmatpush1.bf16.msra.mxu0 0
  %1137 = vmatprep.subr.bf16.mxu0 0
  %1138 = vmatpush1.bf16.msra.mxu0 0
  %1139 = vmatprep.subr.bf16.mxu0 0
  %1140 = vmatpush1.bf16.msra.mxu0 %v1100
  %1141 = vmatprep.subr.bf16.mxu0 0
  %1142 = vmatpush1.bf16.msra.mxu0 %v1099
  %1143 = vmatprep.subr.bf16.mxu0 0
  %1144 = vmatpush2.bf16.msra.mxu0 0
  %1145 = vmatprep.subr.bf16.mxu0 0
  %1146 = vmatpush2.bf16.msra.mxu0 0
  %1147 = vmatprep.subr.bf16.mxu0 0
  %1148 = vmatpush2.bf16.msra.mxu0 0
  %1149 = vmatprep.subr.bf16.mxu0 0
  %1150 = vmatpush2.bf16.msra.mxu0 0
  %1151 = vmatprep.subr.bf16.mxu0 0
  %1152 = vmatpush2.bf16.msra.mxu0 0
  %1153 = vmatprep.subr.bf16.mxu0 0
  %1154 = vmatpush2.bf16.msra.mxu0 0
  %1155 = vmatprep.subr.bf16.mxu0 0
  %1156 = vmatpush2.bf16.msra.mxu0 0
  %1157 = vmatprep.subr.bf16.mxu0 0
  %1158 = vmatpush2.bf16.msra.mxu0 0
  %1159 = vmatprep.mubr.bf16.mxu0 0
  %1160 = vmatmul.mubr.bf16.gmra.mxu0 %v1104
  %v1161 = vpop.f32.mrf.mxu0
  %v1162 = vadd.f32 %v1089, %v1161
  %v1163 = vpop.f32.mrf.mxu0
  %v1164 = vpop.f32.mrf.mxu0
  %v1165 = vadd.f32 %v1089, %v1164
  %v1166 = vpop.f32.mrf.mxu0
  %1167 = vmatprep.mubr.bf16.mxu0 0
  %1168 = vmatmul.mubr.bf16.gmra.mxu0 %v1107
  %v1169 = vpop.f32.mrf.mxu0
  %v1170 = vadd.f32 %v1089, %v1169
  %v1171 = vpop.f32.mrf.mxu0
  %v1172 = vpop.f32.mrf.mxu0
  %v1173 = vadd.f32 %v1089, %v1172
  %v1174 = vpop.f32.mrf.mxu0
  %1175 = vmatprep.mubr.bf16.mxu0 0
  %1176 = vmatmul.mubr.bf16.gmra.mxu0 %v1110
  %v1177 = vpop.f32.mrf.mxu0
  %v1178 = vadd.f32 %v1089, %v1177
  %v1179 = vpop.f32.mrf.mxu0
  %v1180 = vpop.f32.mrf.mxu0
  %v1181 = vadd.f32 %v1089, %v1180
  %v1182 = vpop.f32.mrf.mxu0
  %1183 = vmatprep.mubr.bf16.mxu0 0
  %1184 = vmatmul.mubr.bf16.gmra.mxu0 %v1113
  %v1185 = vpop.f32.mrf.mxu0
  %v1186 = vadd.f32 %v1089, %v1185
  %v1187 = vpop.f32.mrf.mxu0
  %v1188 = vpop.f32.mrf.mxu0
  %v1189 = vadd.f32 %v1089, %v1188
  %v1190 = vpop.f32.mrf.mxu0
  %1191 = vmatprep.mubr.bf16.mxu0 0
  %1192 = vmatmul.mubr.bf16.gmra.mxu0 %v1116
  %v1193 = vpop.f32.mrf.mxu0
  %v1194 = vadd.f32 %v1089, %v1193
  %v1195 = vpop.f32.mrf.mxu0
  %v1196 = vpop.f32.mrf.mxu0
  %v1197 = vadd.f32 %v1089, %v1196
  %v1198 = vpop.f32.mrf.mxu0
  %1199 = vmatprep.mubr.bf16.mxu0 0
  %1200 = vmatmul.mubr.bf16.gmra.mxu0 %v1119
  %v1201 = vpop.f32.mrf.mxu0
  %v1202 = vadd.f32 %v1089, %v1201
  %v1203 = vpop.f32.mrf.mxu0
  %v1204 = vpop.f32.mrf.mxu0
  %v1205 = vadd.f32 %v1089, %v1204
  %v1206 = vpop.f32.mrf.mxu0
  %1207 = vmatprep.mubr.bf16.mxu0 0
  %1208 = vmatmul.mubr.bf16.gmra.mxu0 %v1122
  %v1209 = vpop.f32.mrf.mxu0
  %v1210 = vadd.f32 %v1089, %v1209
  %v1211 = vpop.f32.mrf.mxu0
  %v1212 = vpop.f32.mrf.mxu0
  %v1213 = vadd.f32 %v1089, %v1212
  %v1214 = vpop.f32.mrf.mxu0
  %1215 = vmatprep.mubr.bf16.mxu0 0
  %1216 = vmatmul.mubr.bf16.gmra.mxu0 %v1125
  %v1217 = vpop.f32.mrf.mxu0
  %v1218 = vadd.f32 %v1089, %v1217
  %v1219 = vpop.f32.mrf.mxu0
  %v1220 = vpop.f32.mrf.mxu0
  %v1221 = vadd.f32 %v1089, %v1220
  %v1222 = vpop.f32.mrf.mxu0
  %1223 = vdwg.mxu0
  %v1224 = vsel %vm293, %v1162, -inf
  %1225 = vmax.xlane.f32.xlu0 %v1224
  %v1226 = vpop.xlane.xlu0 %1225
  %v1227 = vsel %vm293, %v1165, -inf
  %1228 = vmax.xlane.f32.xlu0 %v1227
  %v1229 = vpop.xlane.xlu0 %1228
  %v1230 = vsel %vm293, %v1170, -inf
  %1231 = vmax.xlane.f32.xlu0 %v1230
  %v1232 = vpop.xlane.xlu0 %1231
  %v1233 = vsel %vm293, %v1173, -inf
  %1234 = vmax.xlane.f32.xlu0 %v1233
  %v1235 = vpop.xlane.xlu0 %1234
  %v1236 = vsel %vm293, %v1178, -inf
  %1237 = vmax.xlane.f32.xlu0 %v1236
  %v1238 = vpop.xlane.xlu0 %1237
  %v1239 = vsel %vm293, %v1181, -inf
  %1240 = vmax.xlane.f32.xlu0 %v1239
  %v1241 = vpop.xlane.xlu0 %1240
  %v1242 = vsel %vm293, %v1186, -inf
  %1243 = vmax.xlane.f32.xlu0 %v1242
  %v1244 = vpop.xlane.xlu0 %1243
  %v1245 = vsel %vm293, %v1189, -inf
  %1246 = vmax.xlane.f32.xlu0 %v1245
  %v1247 = vpop.xlane.xlu0 %1246
  %v1248 = vsel %vm293, %v1194, -inf
  %1249 = vmax.xlane.f32.xlu0 %v1248
  %v1250 = vpop.xlane.xlu0 %1249
  %v1251 = vsel %vm293, %v1197, -inf
  %1252 = vmax.xlane.f32.xlu0 %v1251
  %v1253 = vpop.xlane.xlu0 %1252
  %v1254 = vsel %vm293, %v1202, -inf
  %1255 = vmax.xlane.f32.xlu0 %v1254
  %v1256 = vpop.xlane.xlu0 %1255
  %v1257 = vsel %vm293, %v1205, -inf
  %1258 = vmax.xlane.f32.xlu0 %v1257
  %v1259 = vpop.xlane.xlu0 %1258
  %v1260 = vsel %vm293, %v1210, -inf
  %1261 = vmax.xlane.f32.xlu0 %v1260
  %v1262 = vpop.xlane.xlu0 %1261
  %v1263 = vsel %vm293, %v1213, -inf
  %1264 = vmax.xlane.f32.xlu0 %v1263
  %v1265 = vpop.xlane.xlu0 %1264
  %v1266 = vsel %vm293, %v1218, -inf
  %1267 = vmax.xlane.f32.xlu0 %v1266
  %v1268 = vpop.xlane.xlu0 %1267
  %v1269 = vsel %vm293, %v1221, -inf
  %1270 = vmax.xlane.f32.xlu0 %v1269
  %v1271 = vpop.xlane.xlu0 %1270
  %v1272 = vsub.f32 %v1162, %v1226
  %v1273 = vsub.f32 %v1165, %v1229
  %v1274 = vsub.f32 %v1170, %v1232
  %v1275 = vsub.f32 %v1173, %v1235
  %v1276 = vsub.f32 %v1178, %v1238
  %v1277 = vsub.f32 %v1181, %v1241
  %v1278 = vsub.f32 %v1186, %v1244
  %v1279 = vsub.f32 %v1189, %v1247
  %v1280 = vsub.f32 %v1194, %v1250
  %v1281 = vsub.f32 %v1197, %v1253
  %v1282 = vsub.f32 %v1202, %v1256
  %v1283 = vsub.f32 %v1205, %v1259
  %v1284 = vsub.f32 %v1210, %v1262
  %v1285 = vsub.f32 %v1213, %v1265
  %v1286 = vsub.f32 %v1218, %v1268
  %v1287 = vsub.f32 %v1221, %v1271
  %v1288 = vmul.f32 %v1272, 1.442695
  %v1289 = vpow.pop %v1288
  %v1290 = vmul.f32 %v1273, 1.442695
  %v1291 = vpow.pop %v1290
  %v1292 = vmul.f32 %v1274, 1.442695
  %v1293 = vpow.pop %v1292
  %v1294 = vmul.f32 %v1275, 1.442695
  %v1295 = vpow.pop %v1294
  %v1296 = vmul.f32 %v1276, 1.442695
  %v1297 = vpow.pop %v1296
  %v1298 = vmul.f32 %v1277, 1.442695
  %v1299 = vpow.pop %v1298
  %v1300 = vmul.f32 %v1278, 1.442695
  %v1301 = vpow.pop %v1300
  %v1302 = vmul.f32 %v1279, 1.442695
  %v1303 = vpow.pop %v1302
  %v1304 = vmul.f32 %v1280, 1.442695
  %v1305 = vpow.pop %v1304
  %v1306 = vmul.f32 %v1281, 1.442695
  %v1307 = vpow.pop %v1306
  %v1308 = vmul.f32 %v1282, 1.442695
  %v1309 = vpow.pop %v1308
  %v1310 = vmul.f32 %v1283, 1.442695
  %v1311 = vpow.pop %v1310
  %v1312 = vmul.f32 %v1284, 1.442695
  %v1313 = vpow.pop %v1312
  %v1314 = vmul.f32 %v1285, 1.442695
  %v1315 = vpow.pop %v1314
  %v1316 = vmul.f32 %v1286, 1.442695
  %v1317 = vpow.pop %v1316
  %v1318 = vmul.f32 %v1287, 1.442695
  %v1319 = vpow.pop %v1318
  %v1320 = vsel %vm293, %v1289, 0.0
  %1321 = vadd.xlane.f32.xlu0 %v1320
  %v1322 = vpop.xlane.xlu0 %1321
  %v1323 = vsel %vm293, %v1291, 0.0
  %1324 = vadd.xlane.f32.xlu0 %v1323
  %v1325 = vpop.xlane.xlu0 %1324
  %v1326 = vsel %vm293, %v1293, 0.0
  %1327 = vadd.xlane.f32.xlu0 %v1326
  %v1328 = vpop.xlane.xlu0 %1327
  %v1329 = vsel %vm293, %v1295, 0.0
  %1330 = vadd.xlane.f32.xlu0 %v1329
  %v1331 = vpop.xlane.xlu0 %1330
  %v1332 = vsel %vm293, %v1297, 0.0
  %1333 = vadd.xlane.f32.xlu0 %v1332
  %v1334 = vpop.xlane.xlu0 %1333
  %v1335 = vsel %vm293, %v1299, 0.0
  %1336 = vadd.xlane.f32.xlu0 %v1335
  %v1337 = vpop.xlane.xlu0 %1336
  %v1338 = vsel %vm293, %v1301, 0.0
  %1339 = vadd.xlane.f32.xlu0 %v1338
  %v1340 = vpop.xlane.xlu0 %1339
  %v1341 = vsel %vm293, %v1303, 0.0
  %1342 = vadd.xlane.f32.xlu0 %v1341
  %v1343 = vpop.xlane.xlu0 %1342
  %v1344 = vsel %vm293, %v1305, 0.0
  %1345 = vadd.xlane.f32.xlu0 %v1344
  %v1346 = vpop.xlane.xlu0 %1345
  %v1347 = vsel %vm293, %v1307, 0.0
  %1348 = vadd.xlane.f32.xlu0 %v1347
  %v1349 = vpop.xlane.xlu0 %1348
  %v1350 = vsel %vm293, %v1309, 0.0
  %1351 = vadd.xlane.f32.xlu0 %v1350
  %v1352 = vpop.xlane.xlu0 %1351
  %v1353 = vsel %vm293, %v1311, 0.0
  %1354 = vadd.xlane.f32.xlu0 %v1353
  %v1355 = vpop.xlane.xlu0 %1354
  %v1356 = vsel %vm293, %v1313, 0.0
  %1357 = vadd.xlane.f32.xlu0 %v1356
  %v1358 = vpop.xlane.xlu0 %1357
  %v1359 = vsel %vm293, %v1315, 0.0
  %1360 = vadd.xlane.f32.xlu0 %v1359
  %v1361 = vpop.xlane.xlu0 %1360
  %v1362 = vsel %vm293, %v1317, 0.0
  %1363 = vadd.xlane.f32.xlu0 %v1362
  %v1364 = vpop.xlane.xlu0 %1363
  %v1365 = vsel %vm293, %v1319, 0.0
  %1366 = vadd.xlane.f32.xlu0 %v1365
  %v1367 = vpop.xlane.xlu0 %1366
  %v1368 = vrcp.pop %v1322
  %v1369 = vrcp.pop %v1325
  %v1370 = vrcp.pop %v1328
  %v1371 = vrcp.pop %v1331
  %v1372 = vrcp.pop %v1334
  %v1373 = vrcp.pop %v1337
  %v1374 = vrcp.pop %v1340
  %v1375 = vrcp.pop %v1343
  %v1376 = vrcp.pop %v1346
  %v1377 = vrcp.pop %v1349
  %v1378 = vrcp.pop %v1352
  %v1379 = vrcp.pop %v1355
  %v1380 = vrcp.pop %v1358
  %v1381 = vrcp.pop %v1361
  %v1382 = vrcp.pop %v1364
  %v1383 = vrcp.pop %v1367
  %v1384 = vmul.f32 %v1289, %v1368
  %v1385 = vmul.f32 %v1291, %v1369
  %v1386 = vmul.f32 %v1293, %v1370
  %v1387 = vmul.f32 %v1295, %v1371
  %v1388 = vmul.f32 %v1297, %v1372
  %v1389 = vmul.f32 %v1299, %v1373
  %v1390 = vmul.f32 %v1301, %v1374
  %v1391 = vmul.f32 %v1303, %v1375
  %v1392 = vmul.f32 %v1305, %v1376
  %v1393 = vmul.f32 %v1307, %v1377
  %v1394 = vmul.f32 %v1309, %v1378
  %v1395 = vmul.f32 %v1311, %v1379
  %v1396 = vmul.f32 %v1313, %v1380
  %v1397 = vmul.f32 %v1315, %v1381
  %v1398 = vmul.f32 %v1317, %v1382
  %v1399 = vmul.f32 %v1319, %v1383
  %1400 = vst.msk [vmem:[%s10] sm:$0xff] %vm293, %v1384
  %1401 = vst.msk [vmem:[%s10 + $0x8] sm:$0xff] %vm293, %v1385
  %1402 = vst.msk [vmem:[%s10 + $0x10] sm:$0xff] %vm293, %v1386
  %1403 = vst.msk [vmem:[%s10 + $0x18] sm:$0xff] %vm293, %v1387
  %1404 = vst.msk [vmem:[%s10 + $0x20] sm:$0xff] %vm293, %v1388
  %1405 = vst.msk [vmem:[%s10 + $0x28] sm:$0xff] %vm293, %v1389
  %1406 = vst.msk [vmem:[%s10 + $0x30] sm:$0xff] %vm293, %v1390
  %1407 = vst.msk [vmem:[%s10 + $0x38] sm:$0xff] %vm293, %v1391
  %1408 = vst.msk [vmem:[%s10 + $0x40] sm:$0xff] %vm293, %v1392
  %1409 = vst.msk [vmem:[%s10 + $0x48] sm:$0xff] %vm293, %v1393
  %1410 = vst.msk [vmem:[%s10 + $0x50] sm:$0xff] %vm293, %v1394
  %1411 = vst.msk [vmem:[%s10 + $0x58] sm:$0xff] %vm293, %v1395
  %1412 = vst.msk [vmem:[%s10 + $0x60] sm:$0xff] %vm293, %v1396
  %1413 = vst.msk [vmem:[%s10 + $0x68] sm:$0xff] %vm293, %v1397
  %1414 = vst.msk [vmem:[%s10 + $0x70] sm:$0xff] %vm293, %v1398
  %1415 = vst.msk [vmem:[%s10 + $0x78] sm:$0xff] %vm293, %v1399
  // Predicated region
  $region42: #{tpu_custom_call.1} parent=0 // pred_check
    _
  $region43: #{tpu_custom_call.1} parent=0 // pred_check_branch
    %1417 = sbr.rel (0) target = $region45
  $region44: #{tpu_custom_call.1} parent=0 // pred_region
    _
  $region45: #{tpu_custom_call.1} parent=0 // pred_fallthru
    _
  // Predicated region
  $region46: #{tpu_custom_call.1} parent=0 // pred_check
    _
  $region47: #{tpu_custom_call.1} parent=0 // pred_check_branch
    %1419 = sbr.rel (0) target = $region49
  $region48: #{tpu_custom_call.1} parent=0 // pred_region
    _
  $region49: #{tpu_custom_call.1} parent=0 // pred_fallthru
    _

// kernel: tpu_custom_call.1
$region0: #{tpu_custom_call.1}
  #allocation0 [shape = 'u32[]', space=smem, size = 0x4, offset = 0x4, fixed_abs, tag = 'smem constant byte address 0x4 - core index']
  #allocation1 [shape = 'u32[144,128]{1,0:T(1,128)}', space=vmem, size = 0x12000, scoped, tag = 'internal scratch']
  %s0 = inlined_call_operand.vmem [shape: bf16[128,8], index: 0, kind: input, shape index: {}]
  %s1 = inlined_call_operand.vmem [shape: bf16[128,16], index: 1, kind: input, shape index: {}]
  %s2 = inlined_call_operand.vmem [shape: bf16[8,32], index: 2, kind: input, shape index: {}]
  %s3 = inlined_call_operand.vmem [shape: f32[1,32], index: 3, kind: input, shape index: {}]
  %s4 = inlined_call_operand.vmem [shape: bf16[16,32], index: 4, kind: input, shape index: {}]
  %s5 = inlined_call_operand.vmem [shape: f32[1,32], index: 5, kind: input, shape index: {}]
  %s6 = inlined_call_operand.vmem [shape: bf16[3,32,32], index: 6, kind: input, shape index: {}]
  %s7 = inlined_call_operand.vmem [shape: f32[3,1,32], index: 7, kind: input, shape index: {}]
  %s8 = inlined_call_operand.vmem [shape: bf16[32,8], index: 8, kind: input, shape index: {}]
  %s9 = inlined_call_operand.vmem [shape: f32[1,8], index: 9, kind: input, shape index: {}]
  %s10 = inlined_call_operand.vmem [shape: f32[128,8], index: 10, kind: output, shape index: {}]
  %s11 = sld [smem:[#allocation0]]
  $region50: #{tpu_custom_call.1} parent=0
    _
  %s13 = ssub.s32 1, %s11
  %s14 = scalar_select 0, %s13, %s11
  // Predicated region
  $region2: #{tpu_custom_call.1} parent=0 // pred_check
    _
  $region3: #{tpu_custom_call.1} parent=0 // pred_check_branch
    %16 = sbr.rel (0) target = $region5
  $region4: #{tpu_custom_call.1} parent=0 // pred_region
    _
  $region5: #{tpu_custom_call.1} parent=0 // pred_fallthru
    _
  // Predicated region
  $region6: #{tpu_custom_call.1} parent=0 // pred_check
    _
  $region7: #{tpu_custom_call.1} parent=0 // pred_check_branch
    %18 = sbr.rel (0) target = $region9
  $region8: #{tpu_custom_call.1} parent=0 // pred_region
    _
  $region9: #{tpu_custom_call.1} parent=0 // pred_fallthru
    _
  // Predicated region
  $region10: #{tpu_custom_call.1} parent=0 // pred_check
    _
  $region11: #{tpu_custom_call.1} parent=0 // pred_check_branch
    %20 = sbr.rel (0) target = $region13
  $region12: #{tpu_custom_call.1} parent=0 // pred_region
    _
  $region13: #{tpu_custom_call.1} parent=0 // pred_fallthru
    _
  // Predicated region
  $region14: #{tpu_custom_call.1} parent=0 // pred_check
    _
  $region15: #{tpu_custom_call.1} parent=0 // pred_check_branch
    %22 = sbr.rel (0) target = $region17
  $region16: #{tpu_custom_call.1} parent=0 // pred_region
    _
  $region17: #{tpu_custom_call.1} parent=0 // pred_fallthru
    _
  // Predicated region
  $region18: #{tpu_custom_call.1} parent=0 // pred_check
    _
  $region19: #{tpu_custom_call.1} parent=0 // pred_check_branch
    %24 = sbr.rel (0) target = $region21
  $region20: #{tpu_custom_call.1} parent=0 // pred_region
    _
  $region21: #{tpu_custom_call.1} parent=0 // pred_fallthru
    _
  // Predicated region
  $region22: #{tpu_custom_call.1} parent=0 // pred_check
    _
  $region23: #{tpu_custom_call.1} parent=0 // pred_check_branch
    %26 = sbr.rel (0) target = $region25
  $region24: #{tpu_custom_call.1} parent=0 // pred_region
    _
  $region25: #{tpu_custom_call.1} parent=0 // pred_fallthru
    _
  // Predicated region
  $region26: #{tpu_custom_call.1} parent=0 // pred_check
    _
  $region27: #{tpu_custom_call.1} parent=0 // pred_check_branch
    %28 = sbr.rel (0) target = $region29
  $region28: #{tpu_custom_call.1} parent=0 // pred_region
    _
  $region29: #{tpu_custom_call.1} parent=0 // pred_fallthru
    _
  // Predicated region
  $region30: #{tpu_custom_call.1} parent=0 // pred_check
    _
  $region31: #{tpu_custom_call.1} parent=0 // pred_check_branch
    %30 = sbr.rel (0) target = $region33
  $region32: #{tpu_custom_call.1} parent=0 // pred_region
    _
  $region33: #{tpu_custom_call.1} parent=0 // pred_fallthru
    _
  // Predicated region
  $region34: #{tpu_custom_call.1} parent=0 // pred_check
    _
  $region35: #{tpu_custom_call.1} parent=0 // pred_check_branch
    %32 = sbr.rel (0) target = $region37
  $region36: #{tpu_custom_call.1} parent=0 // pred_region
    _
  $region37: #{tpu_custom_call.1} parent=0 // pred_fallthru
    _
  // Predicated region
  $region38: #{tpu_custom_call.1} parent=0 // pred_check
    _
  $region39: #{tpu_custom_call.1} parent=0 // pred_check_branch
    %34 = sbr.rel (0) target = $region41
  $region40: #{tpu_custom_call.1} parent=0 // pred_region
    _
  $region41: #{tpu_custom_call.1} parent=0 // pred_fallthru
    _
  %v36 = vld [vmem:[%s0] sm:$0xf]
  %v37 = vld [vmem:[%s0 + $0x4] sm:$0xf]
  %v38 = vld [vmem:[%s0 + $0x8] sm:$0xf]
  %v39 = vld [vmem:[%s0 + $0xc] sm:$0xf]
  %v40 = vld [vmem:[%s0 + $0x10] sm:$0xf]
  %v41 = vld [vmem:[%s0 + $0x14] sm:$0xf]
  %v42 = vld [vmem:[%s0 + $0x18] sm:$0xf]
  %v43 = vld [vmem:[%s0 + $0x1c] sm:$0xf]
  %v44 = vld [vmem:[%s0 + $0x20] sm:$0xf]
  %v45 = vld [vmem:[%s0 + $0x24] sm:$0xf]
  %v46 = vld [vmem:[%s0 + $0x28] sm:$0xf]
  %v47 = vld [vmem:[%s0 + $0x2c] sm:$0xf]
  %v48 = vld [vmem:[%s0 + $0x30] sm:$0xf]
  %v49 = vld [vmem:[%s0 + $0x34] sm:$0xf]
  %v50 = vld [vmem:[%s0 + $0x38] sm:$0xf]
  %v51 = vld [vmem:[%s0 + $0x3c] sm:$0xf]
  %v52 = vld [vmem:[%s1] sm:$0xf]
  %v53 = vld [vmem:[%s1 + $0x4] sm:$0xf]
  %v54 = vld [vmem:[%s1 + $0x8] sm:$0xf]
  %v55 = vld [vmem:[%s1 + $0xc] sm:$0xf]
  %v56 = vld [vmem:[%s1 + $0x10] sm:$0xf]
  %v57 = vld [vmem:[%s1 + $0x14] sm:$0xf]
  %v58 = vld [vmem:[%s1 + $0x18] sm:$0xf]
  %v59 = vld [vmem:[%s1 + $0x1c] sm:$0xf]
  %v60 = vld [vmem:[%s1 + $0x20] sm:$0xf]
  %v61 = vld [vmem:[%s1 + $0x24] sm:$0xf]
  %v62 = vld [vmem:[%s1 + $0x28] sm:$0xf]
  %v63 = vld [vmem:[%s1 + $0x2c] sm:$0xf]
  %v64 = vld [vmem:[%s1 + $0x30] sm:$0xf]
  %v65 = vld [vmem:[%s1 + $0x34] sm:$0xf]
  %v66 = vld [vmem:[%s1 + $0x38] sm:$0xf]
  %v67 = vld [vmem:[%s1 + $0x3c] sm:$0xf]
  %v68 = vld [vmem:[%s4] sm:$0xf]
  %v69 = vld [vmem:[%s4 + $0x4] sm:$0xf]
  %v70 = vld [vmem:[%s5] sm:$0x1]
  %v72 = vlaneseq
  %v73 = vshrl.u32 %v72, 7
  %v74 = vsub.s32 0, %v73
  %v75 = vrot.slane %v70, %v74
  %v93 = vunpack.c.l.b16 %v52
  %v94 = vunpack.c.l.b16 %v53
  %v95 = vunpack.c.l.b16 %v54
  %v96 = vunpack.c.l.b16 %v55
  %v97 = vunpack.c.l.b16 %v56
  %v98 = vunpack.c.l.b16 %v57
  %v99 = vunpack.c.l.b16 %v58
  %v100 = vunpack.c.l.b16 %v59
  %v101 = vunpack.c.l.b16 %v60
  %v102 = vunpack.c.l.b16 %v61
  %v103 = vunpack.c.l.b16 %v62
  %v104 = vunpack.c.l.b16 %v63
  %v105 = vunpack.c.l.b16 %v64
  %v106 = vunpack.c.l.b16 %v65
  %v107 = vunpack.c.l.b16 %v66
  %v108 = vunpack.c.l.b16 %v67
  %v109 = vpack.c.b16 %v94, %v93
  %v110 = vpack.c.b16 %v96, %v95
  %v111 = vpack.c.b16 %v98, %v97
  %v112 = vpack.c.b16 %v100, %v99
  %v113 = vpack.c.b16 %v102, %v101
  %v114 = vpack.c.b16 %v104, %v103
  %v115 = vpack.c.b16 %v106, %v105
  %v116 = vpack.c.b16 %v108, %v107
  %v119 = vunpack.c.l.b16 %v68
  %v120 = vunpack.c.l.b16 %v69
  %v121 = vpack.c.b16 %v120, %v119
  %vm123 = vcmask 130048
  %v125 = vsel %vm123, %v109, 0
  %v128 = vsel %vm123, %v110, 0
  %v131 = vsel %vm123, %v111, 0
  %v134 = vsel %vm123, %v112, 0
  %v137 = vsel %vm123, %v113, 0
  %v140 = vsel %vm123, %v114, 0
  %v143 = vsel %vm123, %v115, 0
  %v146 = vsel %vm123, %v116, 0
  %148 = vmatprep.subr.bf16.mxu0 0
  %149 = vmatpush1.bf16.msra.mxu0 0
  %150 = vmatprep.subr.bf16.mxu0 0
  %151 = vmatpush1.bf16.msra.mxu0 0
  %152 = vmatprep.subr.bf16.mxu0 0
  %153 = vmatpush1.bf16.msra.mxu0 0
  %154 = vmatprep.subr.bf16.mxu0 0
  %155 = vmatpush1.bf16.msra.mxu0 0
  %156 = vmatprep.subr.bf16.mxu0 0
  %157 = vmatpush1.bf16.msra.mxu0 0
  %158 = vmatprep.subr.bf16.mxu0 0
  %159 = vmatpush1.bf16.msra.mxu0 0
  %160 = vmatprep.subr.bf16.mxu0 0
  %161 = vmatpush1.bf16.msra.mxu0 0
  %162 = vmatprep.subr.bf16.mxu0 0
  %163 = vmatpush1.bf16.msra.mxu0 %v121
  %164 = vmatprep.subr.bf16.mxu0 0
  %165 = vmatpush2.bf16.msra.mxu0 0
  %166 = vmatprep.subr.bf16.mxu0 0
  %167 = vmatpush2.bf16.msra.mxu0 0
  %168 = vmatprep.subr.bf16.mxu0 0
  %169 = vmatpush2.bf16.msra.mxu0 0
  %170 = vmatprep.subr.bf16.mxu0 0
  %171 = vmatpush2.bf16.msra.mxu0 0
  %172 = vmatprep.subr.bf16.mxu0 0
  %173 = vmatpush2.bf16.msra.mxu0 0
  %174 = vmatprep.subr.bf16.mxu0 0
  %175 = vmatpush2.bf16.msra.mxu0 0
  %176 = vmatprep.subr.bf16.mxu0 0
  %177 = vmatpush2.bf16.msra.mxu0 0
  %178 = vmatprep.subr.bf16.mxu0 0
  %179 = vmatpush2.bf16.msra.mxu0 0
  %180 = vmatprep.mubr.bf16.mxu0 0
  %181 = vmatmul.mubr.bf16.gmra.mxu0 %v125
  %v182 = vpop.f32.mrf.mxu0
  %v183 = vadd.f32 %v75, %v182
  %v184 = vpop.f32.mrf.mxu0
  %v185 = vpop.f32.mrf.mxu0
  %v186 = vadd.f32 %v75, %v185
  %v187 = vpop.f32.mrf.mxu0
  %188 = vmatprep.mubr.bf16.mxu0 0
  %189 = vmatmul.mubr.bf16.gmra.mxu0 %v128
  %v190 = vpop.f32.mrf.mxu0
  %v191 = vadd.f32 %v75, %v190
  %v192 = vpop.f32.mrf.mxu0
  %v193 = vpop.f32.mrf.mxu0
  %v194 = vadd.f32 %v75, %v193
  %v195 = vpop.f32.mrf.mxu0
  %196 = vmatprep.mubr.bf16.mxu0 0
  %197 = vmatmul.mubr.bf16.gmra.mxu0 %v131
  %v198 = vpop.f32.mrf.mxu0
  %v199 = vadd.f32 %v75, %v198
  %v200 = vpop.f32.mrf.mxu0
  %v201 = vpop.f32.mrf.mxu0
  %v202 = vadd.f32 %v75, %v201
  %v203 = vpop.f32.mrf.mxu0
  %204 = vmatprep.mubr.bf16.mxu0 0
  %205 = vmatmul.mubr.bf16.gmra.mxu0 %v134
  %v206 = vpop.f32.mrf.mxu0
  %v207 = vadd.f32 %v75, %v206
  %v208 = vpop.f32.mrf.mxu0
  %v209 = vpop.f32.mrf.mxu0
  %v210 = vadd.f32 %v75, %v209
  %v211 = vpop.f32.mrf.mxu0
  %212 = vmatprep.mubr.bf16.mxu0 0
  %213 = vmatmul.mubr.bf16.gmra.mxu0 %v137
  %v214 = vpop.f32.mrf.mxu0
  %v215 = vadd.f32 %v75, %v214
  %v216 = vpop.f32.mrf.mxu0
  %v217 = vpop.f32.mrf.mxu0
  %v218 = vadd.f32 %v75, %v217
  %v219 = vpop.f32.mrf.mxu0
  %220 = vmatprep.mubr.bf16.mxu0 0
  %221 = vmatmul.mubr.bf16.gmra.mxu0 %v140
  %v222 = vpop.f32.mrf.mxu0
  %v223 = vadd.f32 %v75, %v222
  %v224 = vpop.f32.mrf.mxu0
  %v225 = vpop.f32.mrf.mxu0
  %v226 = vadd.f32 %v75, %v225
  %v227 = vpop.f32.mrf.mxu0
  %228 = vmatprep.mubr.bf16.mxu0 0
  %229 = vmatmul.mubr.bf16.gmra.mxu0 %v143
  %v230 = vpop.f32.mrf.mxu0
  %v231 = vadd.f32 %v75, %v230
  %v232 = vpop.f32.mrf.mxu0
  %v233 = vpop.f32.mrf.mxu0
  %v234 = vadd.f32 %v75, %v233
  %v235 = vpop.f32.mrf.mxu0
  %236 = vmatprep.mubr.bf16.mxu0 0
  %237 = vmatmul.mubr.bf16.gmra.mxu0 %v146
  %v238 = vpop.f32.mrf.mxu0
  %v239 = vadd.f32 %v75, %v238
  %v240 = vpop.f32.mrf.mxu0
  %v241 = vpop.f32.mrf.mxu0
  %v242 = vadd.f32 %v75, %v241
  %v243 = vpop.f32.mrf.mxu0
  %244 = vdwg.mxu0
  %v245 = vld [vmem:[%s2] sm:$0xf]
  %v246 = vld [vmem:[%s3] sm:$0x1]
  %v248 = vlaneseq
  %v249 = vshrl.u32 %v248, 7
  %v250 = vsub.s32 0, %v249
  %v251 = vrot.slane %v246, %v250
  %v269 = vunpack.c.l.b16 %v36
  %v270 = vunpack.c.l.b16 %v37
  %v271 = vunpack.c.l.b16 %v38
  %v272 = vunpack.c.l.b16 %v39
  %v273 = vunpack.c.l.b16 %v40
  %v274 = vunpack.c.l.b16 %v41
  %v275 = vunpack.c.l.b16 %v42
  %v276 = vunpack.c.l.b16 %v43
  %v277 = vunpack.c.l.b16 %v44
  %v278 = vunpack.c.l.b16 %v45
  %v279 = vunpack.c.l.b16 %v46
  %v280 = vunpack.c.l.b16 %v47
  %v281 = vunpack.c.l.b16 %v48
  %v282 = vunpack.c.l.b16 %v49
  %v283 = vunpack.c.l.b16 %v50
  %v284 = vunpack.c.l.b16 %v51
  %v285 = vpack.c.b16 %v270, %v269
  %v286 = vpack.c.b16 %v272, %v271
  %v287 = vpack.c.b16 %v274, %v273
  %v288 = vpack.c.b16 %v276, %v275
  %v289 = vpack.c.b16 %v278, %v277
  %v290 = vpack.c.b16 %v280, %v279
  %v291 = vpack.c.b16 %v282, %v281
  %v292 = vpack.c.b16 %v284, %v283
  %vm293 = vcmask 64512
  %v295 = vsel %vm293, %v285, 0
  %v298 = vsel %vm293, %v286, 0
  %v301 = vsel %vm293, %v287, 0
  %v304 = vsel %vm293, %v288, 0
  %v307 = vsel %vm293, %v289, 0
  %v310 = vsel %vm293, %v290, 0
  %v313 = vsel %vm293, %v291, 0
  %v316 = vsel %vm293, %v292, 0
  %vm318 = vcmask 1043456
  %v320 = vsel %vm318, %v245, 0
  %322 = vmatprep.subr.bf16.mxu0 0
  %323 = vmatpush1.bf16.msra.mxu0 0
  %324 = vmatprep.subr.bf16.mxu0 0
  %325 = vmatpush1.bf16.msra.mxu0 0
  %326 = vmatprep.subr.bf16.mxu0 0
  %327 = vmatpush1.bf16.msra.mxu0 0
  %328 = vmatprep.subr.bf16.mxu0 0
  %329 = vmatpush1.bf16.msra.mxu0 0
  %330 = vmatprep.subr.bf16.mxu0 0
  %331 = vmatpush1.bf16.msra.mxu0 0
  %332 = vmatprep.subr.bf16.mxu0 0
  %333 = vmatpush1.bf16.msra.mxu0 0
  %334 = vmatprep.subr.bf16.mxu0 0
  %335 = vmatpush1.bf16.msra.mxu0 0
  %336 = vmatprep.subr.bf16.mxu0 0
  %337 = vmatpush1.bf16.msra.mxu0 %v320
  %338 = vmatprep.subr.bf16.mxu0 0
  %339 = vmatpush2.bf16.msra.mxu0 0
  %340 = vmatprep.subr.bf16.mxu0 0
  %341 = vmatpush2.bf16.msra.mxu0 0
  %342 = vmatprep.subr.bf16.mxu0 0
  %343 = vmatpush2.bf16.msra.mxu0 0
  %344 = vmatprep.subr.bf16.mxu0 0
  %345 = vmatpush2.bf16.msra.mxu0 0
  %346 = vmatprep.subr.bf16.mxu0 0
  %347 = vmatpush2.bf16.msra.mxu0 0
  %348 = vmatprep.subr.bf16.mxu0 0
  %349 = vmatpush2.bf16.msra.mxu0 0
  %350 = vmatprep.subr.bf16.mxu0 0
  %351 = vmatpush2.bf16.msra.mxu0 0
  %352 = vmatprep.subr.bf16.mxu0 0
  %353 = vmatpush2.bf16.msra.mxu0 0
  %354 = vmatprep.mubr.bf16.mxu0 0
  %355 = vmatmul.mubr.bf16.gmra.mxu0 %v295
  %v356 = vpop.f32.mrf.mxu0
  %v357 = vadd.f32 %v251, %v356
  %v358 = vpop.f32.mrf.mxu0
  %v359 = vpop.f32.mrf.mxu0
  %v360 = vadd.f32 %v251, %v359
  %v361 = vpop.f32.mrf.mxu0
  %362 = vmatprep.mubr.bf16.mxu0 0
  %363 = vmatmul.mubr.bf16.gmra.mxu0 %v298
  %v364 = vpop.f32.mrf.mxu0
  %v365 = vadd.f32 %v251, %v364
  %v366 = vpop.f32.mrf.mxu0
  %v367 = vpop.f32.mrf.mxu0
  %v368 = vadd.f32 %v251, %v367
  %v369 = vpop.f32.mrf.mxu0
  %370 = vmatprep.mubr.bf16.mxu0 0
  %371 = vmatmul.mubr.bf16.gmra.mxu0 %v301
  %v372 = vpop.f32.mrf.mxu0
  %v373 = vadd.f32 %v251, %v372
  %v374 = vpop.f32.mrf.mxu0
  %v375 = vpop.f32.mrf.mxu0
  %v376 = vadd.f32 %v251, %v375
  %v377 = vpop.f32.mrf.mxu0
  %378 = vmatprep.mubr.bf16.mxu0 0
  %379 = vmatmul.mubr.bf16.gmra.mxu0 %v304
  %v380 = vpop.f32.mrf.mxu0
  %v381 = vadd.f32 %v251, %v380
  %v382 = vpop.f32.mrf.mxu0
  %v383 = vpop.f32.mrf.mxu0
  %v384 = vadd.f32 %v251, %v383
  %v385 = vpop.f32.mrf.mxu0
  %386 = vmatprep.mubr.bf16.mxu0 0
  %387 = vmatmul.mubr.bf16.gmra.mxu0 %v307
  %v388 = vpop.f32.mrf.mxu0
  %v389 = vadd.f32 %v251, %v388
  %v390 = vpop.f32.mrf.mxu0
  %v391 = vpop.f32.mrf.mxu0
  %v392 = vadd.f32 %v251, %v391
  %v393 = vpop.f32.mrf.mxu0
  %394 = vmatprep.mubr.bf16.mxu0 0
  %395 = vmatmul.mubr.bf16.gmra.mxu0 %v310
  %v396 = vpop.f32.mrf.mxu0
  %v397 = vadd.f32 %v251, %v396
  %v398 = vpop.f32.mrf.mxu0
  %v399 = vpop.f32.mrf.mxu0
  %v400 = vadd.f32 %v251, %v399
  %v401 = vpop.f32.mrf.mxu0
  %402 = vmatprep.mubr.bf16.mxu0 0
  %403 = vmatmul.mubr.bf16.gmra.mxu0 %v313
  %v404 = vpop.f32.mrf.mxu0
  %v405 = vadd.f32 %v251, %v404
  %v406 = vpop.f32.mrf.mxu0
  %v407 = vpop.f32.mrf.mxu0
  %v408 = vadd.f32 %v251, %v407
  %v409 = vpop.f32.mrf.mxu0
  %410 = vmatprep.mubr.bf16.mxu0 0
  %411 = vmatmul.mubr.bf16.gmra.mxu0 %v316
  %v412 = vpop.f32.mrf.mxu0
  %v413 = vadd.f32 %v251, %v412
  %v414 = vpop.f32.mrf.mxu0
  %v415 = vpop.f32.mrf.mxu0
  %v416 = vadd.f32 %v251, %v415
  %v417 = vpop.f32.mrf.mxu0
  %418 = vdwg.mxu0
  %v419 = vadd.f32 %v357, %v183
  %v420 = vadd.f32 %v360, %v186
  %v421 = vadd.f32 %v365, %v191
  %v422 = vadd.f32 %v368, %v194
  %v423 = vadd.f32 %v373, %v199
  %v424 = vadd.f32 %v376, %v202
  %v425 = vadd.f32 %v381, %v207
  %v426 = vadd.f32 %v384, %v210
  %v427 = vadd.f32 %v389, %v215
  %v428 = vadd.f32 %v392, %v218
  %v429 = vadd.f32 %v397, %v223
  %v430 = vadd.f32 %v400, %v226
  %v431 = vadd.f32 %v405, %v231
  %v432 = vadd.f32 %v408, %v234
  %v433 = vadd.f32 %v413, %v239
  %v434 = vadd.f32 %v416, %v242
  %v435 = vpack.c.bf16 %v420, %v419
  %v436 = vpack.c.bf16 %v422, %v421
  %v437 = vpack.c.bf16 %v424, %v423
  %v438 = vpack.c.bf16 %v426, %v425
  %v439 = vpack.c.bf16 %v428, %v427
  %v440 = vpack.c.bf16 %v430, %v429
  %v441 = vpack.c.bf16 %v432, %v431
  %v442 = vpack.c.bf16 %v434, %v433
  %v443 = vld [vmem:[%s6] sm:$0xf]
  %v444 = vld [vmem:[%s6 + $0x4] sm:$0xf]
  %v445 = vld [vmem:[%s6 + $0x8] sm:$0xf]
  %v446 = vld [vmem:[%s6 + $0xc] sm:$0xf]
  %v447 = vld [vmem:[%s7] sm:$0x1]
  %v449 = vlaneseq
  %v450 = vshrl.u32 %v449, 7
  %v451 = vsub.s32 0, %v450
  %v452 = vrot.slane %v447, %v451
  %v458 = vunpack.c.l.b16 %v443
  %v459 = vunpack.c.l.b16 %v444
  %v460 = vunpack.c.l.b16 %v445
  %v461 = vunpack.c.l.b16 %v446
  %v462 = vpack.c.b16 %v459, %v458
  %v463 = vpack.c.b16 %v461, %v460
  %vm466 = vcmask 261120
  %v468 = vsel %vm466, %v435, 0
  %v471 = vsel %vm466, %v436, 0
  %v474 = vsel %vm466, %v437, 0
  %v477 = vsel %vm466, %v438, 0
  %v480 = vsel %vm466, %v439, 0
  %v483 = vsel %vm466, %v440, 0
  %v486 = vsel %vm466, %v441, 0
  %v489 = vsel %vm466, %v442, 0
  %491 = vmatprep.subr.bf16.mxu0 0
  %492 = vmatpush1.bf16.msra.mxu0 0
  %493 = vmatprep.subr.bf16.mxu0 0
  %494 = vmatpush1.bf16.msra.mxu0 0
  %495 = vmatprep.subr.bf16.mxu0 0
  %496 = vmatpush1.bf16.msra.mxu0 0
  %497 = vmatprep.subr.bf16.mxu0 0
  %498 = vmatpush1.bf16.msra.mxu0 0
  %499 = vmatprep.subr.bf16.mxu0 0
  %500 = vmatpush1.bf16.msra.mxu0 0
  %501 = vmatprep.subr.bf16.mxu0 0
  %502 = vmatpush1.bf16.msra.mxu0 0
  %503 = vmatprep.subr.bf16.mxu0 0
  %504 = vmatpush1.bf16.msra.mxu0 %v463
  %505 = vmatprep.subr.bf16.mxu0 0
  %506 = vmatpush1.bf16.msra.mxu0 %v462
  %507 = vmatprep.subr.bf16.mxu0 0
  %508 = vmatpush2.bf16.msra.mxu0 0
  %509 = vmatprep.subr.bf16.mxu0 0
  %510 = vmatpush2.bf16.msra.mxu0 0
  %511 = vmatprep.subr.bf16.mxu0 0
  %512 = vmatpush2.bf16.msra.mxu0 0
  %513 = vmatprep.subr.bf16.mxu0 0
  %514 = vmatpush2.bf16.msra.mxu0 0
  %515 = vmatprep.subr.bf16.mxu0 0
  %516 = vmatpush2.bf16.msra.mxu0 0
  %517 = vmatprep.subr.bf16.mxu0 0
  %518 = vmatpush2.bf16.msra.mxu0 0
  %519 = vmatprep.subr.bf16.mxu0 0
  %520 = vmatpush2.bf16.msra.mxu0 0
  %521 = vmatprep.subr.bf16.mxu0 0
  %522 = vmatpush2.bf16.msra.mxu0 0
  %523 = vmatprep.mubr.bf16.mxu0 0
  %524 = vmatmul.mubr.bf16.gmra.mxu0 %v468
  %v525 = vpop.f32.mrf.mxu0
  %v526 = vadd.f32 %v452, %v525
  %v527 = vpop.f32.mrf.mxu0
  %v528 = vpop.f32.mrf.mxu0
  %v529 = vadd.f32 %v452, %v528
  %v530 = vpop.f32.mrf.mxu0
  %531 = vmatprep.mubr.bf16.mxu0 0
  %532 = vmatmul.mubr.bf16.gmra.mxu0 %v471
  %v533 = vpop.f32.mrf.mxu0
  %v534 = vadd.f32 %v452, %v533
  %v535 = vpop.f32.mrf.mxu0
  %v536 = vpop.f32.mrf.mxu0
  %v537 = vadd.f32 %v452, %v536
  %v538 = vpop.f32.mrf.mxu0
  %539 = vmatprep.mubr.bf16.mxu0 0
  %540 = vmatmul.mubr.bf16.gmra.mxu0 %v474
  %v541 = vpop.f32.mrf.mxu0
  %v542 = vadd.f32 %v452, %v541
  %v543 = vpop.f32.mrf.mxu0
  %v544 = vpop.f32.mrf.mxu0
  %v545 = vadd.f32 %v452, %v544
  %v546 = vpop.f32.mrf.mxu0
  %547 = vmatprep.mubr.bf16.mxu0 0
  %548 = vmatmul.mubr.bf16.gmra.mxu0 %v477
  %v549 = vpop.f32.mrf.mxu0
  %v550 = vadd.f32 %v452, %v549
  %v551 = vpop.f32.mrf.mxu0
  %v552 = vpop.f32.mrf.mxu0
  %v553 = vadd.f32 %v452, %v552
  %v554 = vpop.f32.mrf.mxu0
  %555 = vmatprep.mubr.bf16.mxu0 0
  %556 = vmatmul.mubr.bf16.gmra.mxu0 %v480
  %v557 = vpop.f32.mrf.mxu0
  %v558 = vadd.f32 %v452, %v557
  %v559 = vpop.f32.mrf.mxu0
  %v560 = vpop.f32.mrf.mxu0
  %v561 = vadd.f32 %v452, %v560
  %v562 = vpop.f32.mrf.mxu0
  %563 = vmatprep.mubr.bf16.mxu0 0
  %564 = vmatmul.mubr.bf16.gmra.mxu0 %v483
  %v565 = vpop.f32.mrf.mxu0
  %v566 = vadd.f32 %v452, %v565
  %v567 = vpop.f32.mrf.mxu0
  %v568 = vpop.f32.mrf.mxu0
  %v569 = vadd.f32 %v452, %v568
  %v570 = vpop.f32.mrf.mxu0
  %571 = vmatprep.mubr.bf16.mxu0 0
  %572 = vmatmul.mubr.bf16.gmra.mxu0 %v486
  %v573 = vpop.f32.mrf.mxu0
  %v574 = vadd.f32 %v452, %v573
  %v575 = vpop.f32.mrf.mxu0
  %v576 = vpop.f32.mrf.mxu0
  %v577 = vadd.f32 %v452, %v576
  %v578 = vpop.f32.mrf.mxu0
  %579 = vmatprep.mubr.bf16.mxu0 0
  %580 = vmatmul.mubr.bf16.gmra.mxu0 %v489
  %v581 = vpop.f32.mrf.mxu0
  %v582 = vadd.f32 %v452, %v581
  %v583 = vpop.f32.mrf.mxu0
  %v584 = vpop.f32.mrf.mxu0
  %v585 = vadd.f32 %v452, %v584
  %v586 = vpop.f32.mrf.mxu0
  %587 = vdwg.mxu0
  %v588 = vmax.f32 %v526, 0.0
  %v589 = vmax.f32 %v529, 0.0
  %v590 = vmax.f32 %v534, 0.0
  %v591 = vmax.f32 %v537, 0.0
  %v592 = vmax.f32 %v542, 0.0
  %v593 = vmax.f32 %v545, 0.0
  %v594 = vmax.f32 %v550, 0.0
  %v595 = vmax.f32 %v553, 0.0
  %v596 = vmax.f32 %v558, 0.0
  %v597 = vmax.f32 %v561, 0.0
  %v598 = vmax.f32 %v566, 0.0
  %v599 = vmax.f32 %v569, 0.0
  %v600 = vmax.f32 %v574, 0.0
  %v601 = vmax.f32 %v577, 0.0
  %v602 = vmax.f32 %v582, 0.0
  %v603 = vmax.f32 %v585, 0.0
  %v604 = vadd.f32 %v419, %v588
  %v605 = vadd.f32 %v420, %v589
  %v606 = vadd.f32 %v421, %v590
  %v607 = vadd.f32 %v422, %v591
  %v608 = vadd.f32 %v423, %v592
  %v609 = vadd.f32 %v424, %v593
  %v610 = vadd.f32 %v425, %v594
  %v611 = vadd.f32 %v426, %v595
  %v612 = vadd.f32 %v427, %v596
  %v613 = vadd.f32 %v428, %v597
  %v614 = vadd.f32 %v429, %v598
  %v615 = vadd.f32 %v430, %v599
  %v616 = vadd.f32 %v431, %v600
  %v617 = vadd.f32 %v432, %v601
  %v618 = vadd.f32 %v433, %v602
  %v619 = vadd.f32 %v434, %v603
  %v620 = vmax.f32 %v604, 0.0
  %v621 = vmax.f32 %v605, 0.0
  %v622 = vmax.f32 %v606, 0.0
  %v623 = vmax.f32 %v607, 0.0
  %v624 = vmax.f32 %v608, 0.0
  %v625 = vmax.f32 %v609, 0.0
  %v626 = vmax.f32 %v610, 0.0
  %v627 = vmax.f32 %v611, 0.0
  %v628 = vmax.f32 %v612, 0.0
  %v629 = vmax.f32 %v613, 0.0
  %v630 = vmax.f32 %v614, 0.0
  %v631 = vmax.f32 %v615, 0.0
  %v632 = vmax.f32 %v616, 0.0
  %v633 = vmax.f32 %v617, 0.0
  %v634 = vmax.f32 %v618, 0.0
  %v635 = vmax.f32 %v619, 0.0
  %v636 = vadd.f32 %v620, %v183
  %v637 = vadd.f32 %v621, %v186
  %v638 = vadd.f32 %v622, %v191
  %v639 = vadd.f32 %v623, %v194
  %v640 = vadd.f32 %v624, %v199
  %v641 = vadd.f32 %v625, %v202
  %v642 = vadd.f32 %v626, %v207
  %v643 = vadd.f32 %v627, %v210
  %v644 = vadd.f32 %v628, %v215
  %v645 = vadd.f32 %v629, %v218
  %v646 = vadd.f32 %v630, %v223
  %v647 = vadd.f32 %v631, %v226
  %v648 = vadd.f32 %v632, %v231
  %v649 = vadd.f32 %v633, %v234
  %v650 = vadd.f32 %v634, %v239
  %v651 = vadd.f32 %v635, %v242
  %v652 = vpack.c.bf16 %v637, %v636
  %v653 = vpack.c.bf16 %v639, %v638
  %v654 = vpack.c.bf16 %v641, %v640
  %v655 = vpack.c.bf16 %v643, %v642
  %v656 = vpack.c.bf16 %v645, %v644
  %v657 = vpack.c.bf16 %v647, %v646
  %v658 = vpack.c.bf16 %v649, %v648
  %v659 = vpack.c.bf16 %v651, %v650
  %s660 = scalar_lea.vmem %s6, 16
  %v661 = vld [vmem:[%s660] sm:$0xf]
  %v662 = vld [vmem:[%s660 + $0x4] sm:$0xf]
  %v663 = vld [vmem:[%s660 + $0x8] sm:$0xf]
  %v664 = vld [vmem:[%s660 + $0xc] sm:$0xf]
  %s665 = scalar_lea.vmem %s7, 1
  %v666 = vld [vmem:[%s665] sm:$0x1]
  %v668 = vlaneseq
  %v669 = vshrl.u32 %v668, 7
  %v670 = vsub.s32 0, %v669
  %v671 = vrot.slane %v666, %v670
  %v677 = vunpack.c.l.b16 %v661
  %v678 = vunpack.c.l.b16 %v662
  %v679 = vunpack.c.l.b16 %v663
  %v680 = vunpack.c.l.b16 %v664
  %v681 = vpack.c.b16 %v678, %v677
  %v682 = vpack.c.b16 %v680, %v679
  %v686 = vsel %vm466, %v652, 0
  %v689 = vsel %vm466, %v653, 0
  %v692 = vsel %vm466, %v654, 0
  %v695 = vsel %vm466, %v655, 0
  %v698 = vsel %vm466, %v656, 0
  %v701 = vsel %vm466, %v657, 0
  %v704 = vsel %vm466, %v658, 0
  %v707 = vsel %vm466, %v659, 0
  %709 = vmatprep.subr.bf16.mxu0 0
  %710 = vmatpush1.bf16.msra.mxu0 0
  %711 = vmatprep.subr.bf16.mxu0 0
  %712 = vmatpush1.bf16.msra.mxu0 0
  %713 = vmatprep.subr.bf16.mxu0 0
  %714 = vmatpush1.bf16.msra.mxu0 0
  %715 = vmatprep.subr.bf16.mxu0 0
  %716 = vmatpush1.bf16.msra.mxu0 0
  %717 = vmatprep.subr.bf16.mxu0 0
  %718 = vmatpush1.bf16.msra.mxu0 0
  %719 = vmatprep.subr.bf16.mxu0 0
  %720 = vmatpush1.bf16.msra.mxu0 0
  %721 = vmatprep.subr.bf16.mxu0 0
  %722 = vmatpush1.bf16.msra.mxu0 %v682
  %723 = vmatprep.subr.bf16.mxu0 0
  %724 = vmatpush1.bf16.msra.mxu0 %v681
  %725 = vmatprep.subr.bf16.mxu0 0
  %726 = vmatpush2.bf16.msra.mxu0 0
  %727 = vmatprep.subr.bf16.mxu0 0
  %728 = vmatpush2.bf16.msra.mxu0 0
  %729 = vmatprep.subr.bf16.mxu0 0
  %730 = vmatpush2.bf16.msra.mxu0 0
  %731 = vmatprep.subr.bf16.mxu0 0
  %732 = vmatpush2.bf16.msra.mxu0 0
  %733 = vmatprep.subr.bf16.mxu0 0
  %734 = vmatpush2.bf16.msra.mxu0 0
  %735 = vmatprep.subr.bf16.mxu0 0
  %736 = vmatpush2.bf16.msra.mxu0 0
  %737 = vmatprep.subr.bf16.mxu0 0
  %738 = vmatpush2.bf16.msra.mxu0 0
  %739 = vmatprep.subr.bf16.mxu0 0
  %740 = vmatpush2.bf16.msra.mxu0 0
  %741 = vmatprep.mubr.bf16.mxu0 0
  %742 = vmatmul.mubr.bf16.gmra.mxu0 %v686
  %v743 = vpop.f32.mrf.mxu0
  %v744 = vadd.f32 %v671, %v743
  %v745 = vpop.f32.mrf.mxu0
  %v746 = vpop.f32.mrf.mxu0
  %v747 = vadd.f32 %v671, %v746
  %v748 = vpop.f32.mrf.mxu0
  %749 = vmatprep.mubr.bf16.mxu0 0
  %750 = vmatmul.mubr.bf16.gmra.mxu0 %v689
  %v751 = vpop.f32.mrf.mxu0
  %v752 = vadd.f32 %v671, %v751
  %v753 = vpop.f32.mrf.mxu0
  %v754 = vpop.f32.mrf.mxu0
  %v755 = vadd.f32 %v671, %v754
  %v756 = vpop.f32.mrf.mxu0
  %757 = vmatprep.mubr.bf16.mxu0 0
  %758 = vmatmul.mubr.bf16.gmra.mxu0 %v692
  %v759 = vpop.f32.mrf.mxu0
  %v760 = vadd.f32 %v671, %v759
  %v761 = vpop.f32.mrf.mxu0
  %v762 = vpop.f32.mrf.mxu0
  %v763 = vadd.f32 %v671, %v762
  %v764 = vpop.f32.mrf.mxu0
  %765 = vmatprep.mubr.bf16.mxu0 0
  %766 = vmatmul.mubr.bf16.gmra.mxu0 %v695
  %v767 = vpop.f32.mrf.mxu0
  %v768 = vadd.f32 %v671, %v767
  %v769 = vpop.f32.mrf.mxu0
  %v770 = vpop.f32.mrf.mxu0
  %v771 = vadd.f32 %v671, %v770
  %v772 = vpop.f32.mrf.mxu0
  %773 = vmatprep.mubr.bf16.mxu0 0
  %774 = vmatmul.mubr.bf16.gmra.mxu0 %v698
  %v775 = vpop.f32.mrf.mxu0
  %v776 = vadd.f32 %v671, %v775
  %v777 = vpop.f32.mrf.mxu0
  %v778 = vpop.f32.mrf.mxu0
  %v779 = vadd.f32 %v671, %v778
  %v780 = vpop.f32.mrf.mxu0
  %781 = vmatprep.mubr.bf16.mxu0 0
  %782 = vmatmul.mubr.bf16.gmra.mxu0 %v701
  %v783 = vpop.f32.mrf.mxu0
  %v784 = vadd.f32 %v671, %v783
  %v785 = vpop.f32.mrf.mxu0
  %v786 = vpop.f32.mrf.mxu0
  %v787 = vadd.f32 %v671, %v786
  %v788 = vpop.f32.mrf.mxu0
  %789 = vmatprep.mubr.bf16.mxu0 0
  %790 = vmatmul.mubr.bf16.gmra.mxu0 %v704
  %v791 = vpop.f32.mrf.mxu0
  %v792 = vadd.f32 %v671, %v791
  %v793 = vpop.f32.mrf.mxu0
  %v794 = vpop.f32.mrf.mxu0
  %v795 = vadd.f32 %v671, %v794
  %v796 = vpop.f32.mrf.mxu0
  %797 = vmatprep.mubr.bf16.mxu0 0
  %798 = vmatmul.mubr.bf16.gmra.mxu0 %v707
  %v799 = vpop.f32.mrf.mxu0
  %v800 = vadd.f32 %v671, %v799
  %v801 = vpop.f32.mrf.mxu0
  %v802 = vpop.f32.mrf.mxu0
  %v803 = vadd.f32 %v671, %v802
  %v804 = vpop.f32.mrf.mxu0
  %805 = vdwg.mxu0
  %v806 = vmax.f32 %v744, 0.0
  %v807 = vmax.f32 %v747, 0.0
  %v808 = vmax.f32 %v752, 0.0
  %v809 = vmax.f32 %v755, 0.0
  %v810 = vmax.f32 %v760, 0.0
  %v811 = vmax.f32 %v763, 0.0
  %v812 = vmax.f32 %v768, 0.0
  %v813 = vmax.f32 %v771, 0.0
  %v814 = vmax.f32 %v776, 0.0
  %v815 = vmax.f32 %v779, 0.0
  %v816 = vmax.f32 %v784, 0.0
  %v817 = vmax.f32 %v787, 0.0
  %v818 = vmax.f32 %v792, 0.0
  %v819 = vmax.f32 %v795, 0.0
  %v820 = vmax.f32 %v800, 0.0
  %v821 = vmax.f32 %v803, 0.0
  %v822 = vadd.f32 %v620, %v806
  %v823 = vadd.f32 %v621, %v807
  %v824 = vadd.f32 %v622, %v808
  %v825 = vadd.f32 %v623, %v809
  %v826 = vadd.f32 %v624, %v810
  %v827 = vadd.f32 %v625, %v811
  %v828 = vadd.f32 %v626, %v812
  %v829 = vadd.f32 %v627, %v813
  %v830 = vadd.f32 %v628, %v814
  %v831 = vadd.f32 %v629, %v815
  %v832 = vadd.f32 %v630, %v816
  %v833 = vadd.f32 %v631, %v817
  %v834 = vadd.f32 %v632, %v818
  %v835 = vadd.f32 %v633, %v819
  %v836 = vadd.f32 %v634, %v820
  %v837 = vadd.f32 %v635, %v821
  %v838 = vmax.f32 %v822, 0.0
  %v839 = vmax.f32 %v823, 0.0
  %v840 = vmax.f32 %v824, 0.0
  %v841 = vmax.f32 %v825, 0.0
  %v842 = vmax.f32 %v826, 0.0
  %v843 = vmax.f32 %v827, 0.0
  %v844 = vmax.f32 %v828, 0.0
  %v845 = vmax.f32 %v829, 0.0
  %v846 = vmax.f32 %v830, 0.0
  %v847 = vmax.f32 %v831, 0.0
  %v848 = vmax.f32 %v832, 0.0
  %v849 = vmax.f32 %v833, 0.0
  %v850 = vmax.f32 %v834, 0.0
  %v851 = vmax.f32 %v835, 0.0
  %v852 = vmax.f32 %v836, 0.0
  %v853 = vmax.f32 %v837, 0.0
  %v854 = vadd.f32 %v838, %v183
  %v855 = vadd.f32 %v839, %v186
  %v856 = vadd.f32 %v840, %v191
  %v857 = vadd.f32 %v841, %v194
  %v858 = vadd.f32 %v842, %v199
  %v859 = vadd.f32 %v843, %v202
  %v860 = vadd.f32 %v844, %v207
  %v861 = vadd.f32 %v845, %v210
  %v862 = vadd.f32 %v846, %v215
  %v863 = vadd.f32 %v847, %v218
  %v864 = vadd.f32 %v848, %v223
  %v865 = vadd.f32 %v849, %v226
  %v866 = vadd.f32 %v850, %v231
  %v867 = vadd.f32 %v851, %v234
  %v868 = vadd.f32 %v852, %v239
  %v869 = vadd.f32 %v853, %v242
  %v870 = vpack.c.bf16 %v855, %v854
  %v871 = vpack.c.bf16 %v857, %v856
  %v872 = vpack.c.bf16 %v859, %v858
  %v873 = vpack.c.bf16 %v861, %v860
  %v874 = vpack.c.bf16 %v863, %v862
  %v875 = vpack.c.bf16 %v865, %v864
  %v876 = vpack.c.bf16 %v867, %v866
  %v877 = vpack.c.bf16 %v869, %v868
  %s878 = scalar_lea.vmem %s6, 32
  %v879 = vld [vmem:[%s878] sm:$0xf]
  %v880 = vld [vmem:[%s878 + $0x4] sm:$0xf]
  %v881 = vld [vmem:[%s878 + $0x8] sm:$0xf]
  %v882 = vld [vmem:[%s878 + $0xc] sm:$0xf]
  %s883 = scalar_lea.vmem %s7, 2
  %v884 = vld [vmem:[%s883] sm:$0x1]
  %v886 = vlaneseq
  %v887 = vshrl.u32 %v886, 7
  %v888 = vsub.s32 0, %v887
  %v889 = vrot.slane %v884, %v888
  %v895 = vunpack.c.l.b16 %v879
  %v896 = vunpack.c.l.b16 %v880
  %v897 = vunpack.c.l.b16 %v881
  %v898 = vunpack.c.l.b16 %v882
  %v899 = vpack.c.b16 %v896, %v895
  %v900 = vpack.c.b16 %v898, %v897
  %v904 = vsel %vm466, %v870, 0
  %v907 = vsel %vm466, %v871, 0
  %v910 = vsel %vm466, %v872, 0
  %v913 = vsel %vm466, %v873, 0
  %v916 = vsel %vm466, %v874, 0
  %v919 = vsel %vm466, %v875, 0
  %v922 = vsel %vm466, %v876, 0
  %v925 = vsel %vm466, %v877, 0
  %927 = vmatprep.subr.bf16.mxu0 0
  %928 = vmatpush1.bf16.msra.mxu0 0
  %929 = vmatprep.subr.bf16.mxu0 0
  %930 = vmatpush1.bf16.msra.mxu0 0
  %931 = vmatprep.subr.bf16.mxu0 0
  %932 = vmatpush1.bf16.msra.mxu0 0
  %933 = vmatprep.subr.bf16.mxu0 0
  %934 = vmatpush1.bf16.msra.mxu0 0
  %935 = vmatprep.subr.bf16.mxu0 0
  %936 = vmatpush1.bf16.msra.mxu0 0
  %937 = vmatprep.subr.bf16.mxu0 0
  %938 = vmatpush1.bf16.msra.mxu0 0
  %939 = vmatprep.subr.bf16.mxu0 0
  %940 = vmatpush1.bf16.msra.mxu0 %v900
  %941 = vmatprep.subr.bf16.mxu0 0
  %942 = vmatpush1.bf16.msra.mxu0 %v899
  %943 = vmatprep.subr.bf16.mxu0 0
  %944 = vmatpush2.bf16.msra.mxu0 0
  %945 = vmatprep.subr.bf16.mxu0 0
  %946 = vmatpush2.bf16.msra.mxu0 0
  %947 = vmatprep.subr.bf16.mxu0 0
  %948 = vmatpush2.bf16.msra.mxu0 0
  %949 = vmatprep.subr.bf16.mxu0 0
  %950 = vmatpush2.bf16.msra.mxu0 0
  %951 = vmatprep.subr.bf16.mxu0 0
  %952 = vmatpush2.bf16.msra.mxu0 0
  %953 = vmatprep.subr.bf16.mxu0 0
  %954 = vmatpush2.bf16.msra.mxu0 0
  %955 = vmatprep.subr.bf16.mxu0 0
  %956 = vmatpush2.bf16.msra.mxu0 0
  %957 = vmatprep.subr.bf16.mxu0 0
  %958 = vmatpush2.bf16.msra.mxu0 0
  %959 = vmatprep.mubr.bf16.mxu0 0
  %960 = vmatmul.mubr.bf16.gmra.mxu0 %v904
  %v961 = vpop.f32.mrf.mxu0
  %v962 = vadd.f32 %v889, %v961
  %v963 = vpop.f32.mrf.mxu0
  %v964 = vpop.f32.mrf.mxu0
  %v965 = vadd.f32 %v889, %v964
  %v966 = vpop.f32.mrf.mxu0
  %967 = vmatprep.mubr.bf16.mxu0 0
  %968 = vmatmul.mubr.bf16.gmra.mxu0 %v907
  %v969 = vpop.f32.mrf.mxu0
  %v970 = vadd.f32 %v889, %v969
  %v971 = vpop.f32.mrf.mxu0
  %v972 = vpop.f32.mrf.mxu0
  %v973 = vadd.f32 %v889, %v972
  %v974 = vpop.f32.mrf.mxu0
  %975 = vmatprep.mubr.bf16.mxu0 0
  %976 = vmatmul.mubr.bf16.gmra.mxu0 %v910
  %v977 = vpop.f32.mrf.mxu0
  %v978 = vadd.f32 %v889, %v977
  %v979 = vpop.f32.mrf.mxu0
  %v980 = vpop.f32.mrf.mxu0
  %v981 = vadd.f32 %v889, %v980
  %v982 = vpop.f32.mrf.mxu0
  %983 = vmatprep.mubr.bf16.mxu0 0
  %984 = vmatmul.mubr.bf16.gmra.mxu0 %v913
  %v985 = vpop.f32.mrf.mxu0
  %v986 = vadd.f32 %v889, %v985
  %v987 = vpop.f32.mrf.mxu0
  %v988 = vpop.f32.mrf.mxu0
  %v989 = vadd.f32 %v889, %v988
  %v990 = vpop.f32.mrf.mxu0
  %991 = vmatprep.mubr.bf16.mxu0 0
  %992 = vmatmul.mubr.bf16.gmra.mxu0 %v916
  %v993 = vpop.f32.mrf.mxu0
  %v994 = vadd.f32 %v889, %v993
  %v995 = vpop.f32.mrf.mxu0
  %v996 = vpop.f32.mrf.mxu0
  %v997 = vadd.f32 %v889, %v996
  %v998 = vpop.f32.mrf.mxu0
  %999 = vmatprep.mubr.bf16.mxu0 0
  %1000 = vmatmul.mubr.bf16.gmra.mxu0 %v919
  %v1001 = vpop.f32.mrf.mxu0
  %v1002 = vadd.f32 %v889, %v1001
  %v1003 = vpop.f32.mrf.mxu0
  %v1004 = vpop.f32.mrf.mxu0
  %v1005 = vadd.f32 %v889, %v1004
  %v1006 = vpop.f32.mrf.mxu0
  %1007 = vmatprep.mubr.bf16.mxu0 0
  %1008 = vmatmul.mubr.bf16.gmra.mxu0 %v922
  %v1009 = vpop.f32.mrf.mxu0
  %v1010 = vadd.f32 %v889, %v1009
  %v1011 = vpop.f32.mrf.mxu0
  %v1012 = vpop.f32.mrf.mxu0
  %v1013 = vadd.f32 %v889, %v1012
  %v1014 = vpop.f32.mrf.mxu0
  %1015 = vmatprep.mubr.bf16.mxu0 0
  %1016 = vmatmul.mubr.bf16.gmra.mxu0 %v925
  %v1017 = vpop.f32.mrf.mxu0
  %v1018 = vadd.f32 %v889, %v1017
  %v1019 = vpop.f32.mrf.mxu0
  %v1020 = vpop.f32.mrf.mxu0
  %v1021 = vadd.f32 %v889, %v1020
  %v1022 = vpop.f32.mrf.mxu0
  %1023 = vdwg.mxu0
  %v1024 = vmax.f32 %v962, 0.0
  %v1025 = vmax.f32 %v965, 0.0
  %v1026 = vmax.f32 %v970, 0.0
  %v1027 = vmax.f32 %v973, 0.0
  %v1028 = vmax.f32 %v978, 0.0
  %v1029 = vmax.f32 %v981, 0.0
  %v1030 = vmax.f32 %v986, 0.0
  %v1031 = vmax.f32 %v989, 0.0
  %v1032 = vmax.f32 %v994, 0.0
  %v1033 = vmax.f32 %v997, 0.0
  %v1034 = vmax.f32 %v1002, 0.0
  %v1035 = vmax.f32 %v1005, 0.0
  %v1036 = vmax.f32 %v1010, 0.0
  %v1037 = vmax.f32 %v1013, 0.0
  %v1038 = vmax.f32 %v1018, 0.0
  %v1039 = vmax.f32 %v1021, 0.0
  %v1040 = vadd.f32 %v838, %v1024
  %v1041 = vadd.f32 %v839, %v1025
  %v1042 = vadd.f32 %v840, %v1026
  %v1043 = vadd.f32 %v841, %v1027
  %v1044 = vadd.f32 %v842, %v1028
  %v1045 = vadd.f32 %v843, %v1029
  %v1046 = vadd.f32 %v844, %v1030
  %v1047 = vadd.f32 %v845, %v1031
  %v1048 = vadd.f32 %v846, %v1032
  %v1049 = vadd.f32 %v847, %v1033
  %v1050 = vadd.f32 %v848, %v1034
  %v1051 = vadd.f32 %v849, %v1035
  %v1052 = vadd.f32 %v850, %v1036
  %v1053 = vadd.f32 %v851, %v1037
  %v1054 = vadd.f32 %v852, %v1038
  %v1055 = vadd.f32 %v853, %v1039
  %v1056 = vmax.f32 %v1040, 0.0
  %v1057 = vmax.f32 %v1041, 0.0
  %v1058 = vmax.f32 %v1042, 0.0
  %v1059 = vmax.f32 %v1043, 0.0
  %v1060 = vmax.f32 %v1044, 0.0
  %v1061 = vmax.f32 %v1045, 0.0
  %v1062 = vmax.f32 %v1046, 0.0
  %v1063 = vmax.f32 %v1047, 0.0
  %v1064 = vmax.f32 %v1048, 0.0
  %v1065 = vmax.f32 %v1049, 0.0
  %v1066 = vmax.f32 %v1050, 0.0
  %v1067 = vmax.f32 %v1051, 0.0
  %v1068 = vmax.f32 %v1052, 0.0
  %v1069 = vmax.f32 %v1053, 0.0
  %v1070 = vmax.f32 %v1054, 0.0
  %v1071 = vmax.f32 %v1055, 0.0
  %v1072 = vpack.c.bf16 %v1057, %v1056
  %v1073 = vpack.c.bf16 %v1059, %v1058
  %v1074 = vpack.c.bf16 %v1061, %v1060
  %v1075 = vpack.c.bf16 %v1063, %v1062
  %v1076 = vpack.c.bf16 %v1065, %v1064
  %v1077 = vpack.c.bf16 %v1067, %v1066
  %v1078 = vpack.c.bf16 %v1069, %v1068
  %v1079 = vpack.c.bf16 %v1071, %v1070
  %v1080 = vld [vmem:[%s8] sm:$0xf]
  %v1081 = vld [vmem:[%s8 + $0x4] sm:$0xf]
  %v1082 = vld [vmem:[%s8 + $0x8] sm:$0xf]
  %v1083 = vld [vmem:[%s8 + $0xc] sm:$0xf]
  %v1084 = vld [vmem:[%s9] sm:$0x1]
  %v1086 = vlaneseq
  %v1087 = vshrl.u32 %v1086, 7
  %v1088 = vsub.s32 0, %v1087
  %v1089 = vrot.slane %v1084, %v1088
  %v1095 = vunpack.c.l.b16 %v1080
  %v1096 = vunpack.c.l.b16 %v1081
  %v1097 = vunpack.c.l.b16 %v1082
  %v1098 = vunpack.c.l.b16 %v1083
  %v1099 = vpack.c.b16 %v1096, %v1095
  %v1100 = vpack.c.b16 %v1098, %v1097
  %v1104 = vsel %vm466, %v1072, 0
  %v1107 = vsel %vm466, %v1073, 0
  %v1110 = vsel %vm466, %v1074, 0
  %v1113 = vsel %vm466, %v1075, 0
  %v1116 = vsel %vm466, %v1076, 0
  %v1119 = vsel %vm466, %v1077, 0
  %v1122 = vsel %vm466, %v1078, 0
  %v1125 = vsel %vm466, %v1079, 0
  %1127 = vmatprep.subr.bf16.mxu0 0
  %1128 = vmatpush1.bf16.msra.mxu0 0
  %1129 = vmatprep.subr.bf16.mxu0 0
  %1130 = vmatpush1.bf16.msra.mxu0 0
  %1131 = vmatprep.subr.bf16.mxu0 0
  %1132 = vmatpush1.bf16.msra.mxu0 0
  %1133 = vmatprep.subr.bf16.mxu0 0
  %1134 = vmatpush1.bf16.msra.mxu0 0
  %1135 = vmatprep.subr.bf16.mxu0 0
  %1136 = vmatpush1.bf16.msra.mxu0 0
  %1137 = vmatprep.subr.bf16.mxu0 0
  %1138 = vmatpush1.bf16.msra.mxu0 0
  %1139 = vmatprep.subr.bf16.mxu0 0
  %1140 = vmatpush1.bf16.msra.mxu0 %v1100
  %1141 = vmatprep.subr.bf16.mxu0 0
  %1142 = vmatpush1.bf16.msra.mxu0 %v1099
  %1143 = vmatprep.subr.bf16.mxu0 0
  %1144 = vmatpush2.bf16.msra.mxu0 0
  %1145 = vmatprep.subr.bf16.mxu0 0
  %1146 = vmatpush2.bf16.msra.mxu0 0
  %1147 = vmatprep.subr.bf16.mxu0 0
  %1148 = vmatpush2.bf16.msra.mxu0 0
  %1149 = vmatprep.subr.bf16.mxu0 0
  %1150 = vmatpush2.bf16.msra.mxu0 0
  %1151 = vmatprep.subr.bf16.mxu0 0
  %1152 = vmatpush2.bf16.msra.mxu0 0
  %1153 = vmatprep.subr.bf16.mxu0 0
  %1154 = vmatpush2.bf16.msra.mxu0 0
  %1155 = vmatprep.subr.bf16.mxu0 0
  %1156 = vmatpush2.bf16.msra.mxu0 0
  %1157 = vmatprep.subr.bf16.mxu0 0
  %1158 = vmatpush2.bf16.msra.mxu0 0
  %1159 = vmatprep.mubr.bf16.mxu0 0
  %1160 = vmatmul.mubr.bf16.gmra.mxu0 %v1104
  %v1161 = vpop.f32.mrf.mxu0
  %v1162 = vadd.f32 %v1089, %v1161
  %v1163 = vpop.f32.mrf.mxu0
  %v1164 = vpop.f32.mrf.mxu0
  %v1165 = vadd.f32 %v1089, %v1164
  %v1166 = vpop.f32.mrf.mxu0
  %1167 = vmatprep.mubr.bf16.mxu0 0
  %1168 = vmatmul.mubr.bf16.gmra.mxu0 %v1107
  %v1169 = vpop.f32.mrf.mxu0
  %v1170 = vadd.f32 %v1089, %v1169
  %v1171 = vpop.f32.mrf.mxu0
  %v1172 = vpop.f32.mrf.mxu0
  %v1173 = vadd.f32 %v1089, %v1172
  %v1174 = vpop.f32.mrf.mxu0
  %1175 = vmatprep.mubr.bf16.mxu0 0
  %1176 = vmatmul.mubr.bf16.gmra.mxu0 %v1110
  %v1177 = vpop.f32.mrf.mxu0
  %v1178 = vadd.f32 %v1089, %v1177
  %v1179 = vpop.f32.mrf.mxu0
  %v1180 = vpop.f32.mrf.mxu0
  %v1181 = vadd.f32 %v1089, %v1180
  %v1182 = vpop.f32.mrf.mxu0
  %1183 = vmatprep.mubr.bf16.mxu0 0
  %1184 = vmatmul.mubr.bf16.gmra.mxu0 %v1113
  %v1185 = vpop.f32.mrf.mxu0
  %v1186 = vadd.f32 %v1089, %v1185
  %v1187 = vpop.f32.mrf.mxu0
  %v1188 = vpop.f32.mrf.mxu0
  %v1189 = vadd.f32 %v1089, %v1188
  %v1190 = vpop.f32.mrf.mxu0
  %1191 = vmatprep.mubr.bf16.mxu0 0
  %1192 = vmatmul.mubr.bf16.gmra.mxu0 %v1116
  %v1193 = vpop.f32.mrf.mxu0
  %v1194 = vadd.f32 %v1089, %v1193
  %v1195 = vpop.f32.mrf.mxu0
  %v1196 = vpop.f32.mrf.mxu0
  %v1197 = vadd.f32 %v1089, %v1196
  %v1198 = vpop.f32.mrf.mxu0
  %1199 = vmatprep.mubr.bf16.mxu0 0
  %1200 = vmatmul.mubr.bf16.gmra.mxu0 %v1119
  %v1201 = vpop.f32.mrf.mxu0
  %v1202 = vadd.f32 %v1089, %v1201
  %v1203 = vpop.f32.mrf.mxu0
  %v1204 = vpop.f32.mrf.mxu0
  %v1205 = vadd.f32 %v1089, %v1204
  %v1206 = vpop.f32.mrf.mxu0
  %1207 = vmatprep.mubr.bf16.mxu0 0
  %1208 = vmatmul.mubr.bf16.gmra.mxu0 %v1122
  %v1209 = vpop.f32.mrf.mxu0
  %v1210 = vadd.f32 %v1089, %v1209
  %v1211 = vpop.f32.mrf.mxu0
  %v1212 = vpop.f32.mrf.mxu0
  %v1213 = vadd.f32 %v1089, %v1212
  %v1214 = vpop.f32.mrf.mxu0
  %1215 = vmatprep.mubr.bf16.mxu0 0
  %1216 = vmatmul.mubr.bf16.gmra.mxu0 %v1125
  %v1217 = vpop.f32.mrf.mxu0
  %v1218 = vadd.f32 %v1089, %v1217
  %v1219 = vpop.f32.mrf.mxu0
  %v1220 = vpop.f32.mrf.mxu0
  %v1221 = vadd.f32 %v1089, %v1220
  %v1222 = vpop.f32.mrf.mxu0
  %1223 = vdwg.mxu0
  %v1224 = vsel %vm293, %v1162, -inf
  %1225 = vmax.xlane.f32.xlu0 %v1224
  %v1226 = vpop.xlane.xlu0 %1225
  %v1227 = vsel %vm293, %v1165, -inf
  %1228 = vmax.xlane.f32.xlu0 %v1227
  %v1229 = vpop.xlane.xlu0 %1228
  %v1230 = vsel %vm293, %v1170, -inf
  %1231 = vmax.xlane.f32.xlu0 %v1230
  %v1232 = vpop.xlane.xlu0 %1231
  %v1233 = vsel %vm293, %v1173, -inf
  %1234 = vmax.xlane.f32.xlu0 %v1233
  %v1235 = vpop.xlane.xlu0 %1234
  %v1236 = vsel %vm293, %v1178, -inf
  %1237 = vmax.xlane.f32.xlu0 %v1236
  %v1238 = vpop.xlane.xlu0 %1237
  %v1239 = vsel %vm293, %v1181, -inf
  %1240 = vmax.xlane.f32.xlu0 %v1239
  %v1241 = vpop.xlane.xlu0 %1240
  %v1242 = vsel %vm293, %v1186, -inf
  %1243 = vmax.xlane.f32.xlu0 %v1242
  %v1244 = vpop.xlane.xlu0 %1243
  %v1245 = vsel %vm293, %v1189, -inf
  %1246 = vmax.xlane.f32.xlu0 %v1245
  %v1247 = vpop.xlane.xlu0 %1246
  %v1248 = vsel %vm293, %v1194, -inf
  %1249 = vmax.xlane.f32.xlu0 %v1248
  %v1250 = vpop.xlane.xlu0 %1249
  %v1251 = vsel %vm293, %v1197, -inf
  %1252 = vmax.xlane.f32.xlu0 %v1251
  %v1253 = vpop.xlane.xlu0 %1252
  %v1254 = vsel %vm293, %v1202, -inf
  %1255 = vmax.xlane.f32.xlu0 %v1254
  %v1256 = vpop.xlane.xlu0 %1255
  %v1257 = vsel %vm293, %v1205, -inf
  %1258 = vmax.xlane.f32.xlu0 %v1257
  %v1259 = vpop.xlane.xlu0 %1258
  %v1260 = vsel %vm293, %v1210, -inf
  %1261 = vmax.xlane.f32.xlu0 %v1260
  %v1262 = vpop.xlane.xlu0 %1261
  %v1263 = vsel %vm293, %v1213, -inf
  %1264 = vmax.xlane.f32.xlu0 %v1263
  %v1265 = vpop.xlane.xlu0 %1264
  %v1266 = vsel %vm293, %v1218, -inf
  %1267 = vmax.xlane.f32.xlu0 %v1266
  %v1268 = vpop.xlane.xlu0 %1267
  %v1269 = vsel %vm293, %v1221, -inf
  %1270 = vmax.xlane.f32.xlu0 %v1269
  %v1271 = vpop.xlane.xlu0 %1270
  %v1272 = vsub.f32 %v1162, %v1226
  %v1273 = vsub.f32 %v1165, %v1229
  %v1274 = vsub.f32 %v1170, %v1232
  %v1275 = vsub.f32 %v1173, %v1235
  %v1276 = vsub.f32 %v1178, %v1238
  %v1277 = vsub.f32 %v1181, %v1241
  %v1278 = vsub.f32 %v1186, %v1244
  %v1279 = vsub.f32 %v1189, %v1247
  %v1280 = vsub.f32 %v1194, %v1250
  %v1281 = vsub.f32 %v1197, %v1253
  %v1282 = vsub.f32 %v1202, %v1256
  %v1283 = vsub.f32 %v1205, %v1259
  %v1284 = vsub.f32 %v1210, %v1262
  %v1285 = vsub.f32 %v1213, %v1265
  %v1286 = vsub.f32 %v1218, %v1268
  %v1287 = vsub.f32 %v1221, %v1271
  %v1288 = vmul.f32 %v1272, 1.442695
  %v1289 = vpow.pop %v1288
  %v1290 = vmul.f32 %v1273, 1.442695
  %v1291 = vpow.pop %v1290
  %v1292 = vmul.f32 %v1274, 1.442695
  %v1293 = vpow.pop %v1292
  %v1294 = vmul.f32 %v1275, 1.442695
  %v1295 = vpow.pop %v1294
  %v1296 = vmul.f32 %v1276, 1.442695
  %v1297 = vpow.pop %v1296
  %v1298 = vmul.f32 %v1277, 1.442695
  %v1299 = vpow.pop %v1298
  %v1300 = vmul.f32 %v1278, 1.442695
  %v1301 = vpow.pop %v1300
  %v1302 = vmul.f32 %v1279, 1.442695
  %v1303 = vpow.pop %v1302
  %v1304 = vmul.f32 %v1280, 1.442695
  %v1305 = vpow.pop %v1304
  %v1306 = vmul.f32 %v1281, 1.442695
  %v1307 = vpow.pop %v1306
  %v1308 = vmul.f32 %v1282, 1.442695
  %v1309 = vpow.pop %v1308
  %v1310 = vmul.f32 %v1283, 1.442695
  %v1311 = vpow.pop %v1310
  %v1312 = vmul.f32 %v1284, 1.442695
  %v1313 = vpow.pop %v1312
  %v1314 = vmul.f32 %v1285, 1.442695
  %v1315 = vpow.pop %v1314
  %v1316 = vmul.f32 %v1286, 1.442695
  %v1317 = vpow.pop %v1316
  %v1318 = vmul.f32 %v1287, 1.442695
  %v1319 = vpow.pop %v1318
  %v1320 = vsel %vm293, %v1289, 0.0
  %1321 = vadd.xlane.f32.xlu0 %v1320
  %v1322 = vpop.xlane.xlu0 %1321
  %v1323 = vsel %vm293, %v1291, 0.0
  %1324 = vadd.xlane.f32.xlu0 %v1323
  %v1325 = vpop.xlane.xlu0 %1324
  %v1326 = vsel %vm293, %v1293, 0.0
  %1327 = vadd.xlane.f32.xlu0 %v1326
  %v1328 = vpop.xlane.xlu0 %1327
  %v1329 = vsel %vm293, %v1295, 0.0
  %1330 = vadd.xlane.f32.xlu0 %v1329
  %v1331 = vpop.xlane.xlu0 %1330
  %v1332 = vsel %vm293, %v1297, 0.0
  %1333 = vadd.xlane.f32.xlu0 %v1332
  %v1334 = vpop.xlane.xlu0 %1333
  %v1335 = vsel %vm293, %v1299, 0.0
  %1336 = vadd.xlane.f32.xlu0 %v1335
  %v1337 = vpop.xlane.xlu0 %1336
  %v1338 = vsel %vm293, %v1301, 0.0
  %1339 = vadd.xlane.f32.xlu0 %v1338
  %v1340 = vpop.xlane.xlu0 %1339
  %v1341 = vsel %vm293, %v1303, 0.0
  %1342 = vadd.xlane.f32.xlu0 %v1341
  %v1343 = vpop.xlane.xlu0 %1342
  %v1344 = vsel %vm293, %v1305, 0.0
  %1345 = vadd.xlane.f32.xlu0 %v1344
  %v1346 = vpop.xlane.xlu0 %1345
  %v1347 = vsel %vm293, %v1307, 0.0
  %1348 = vadd.xlane.f32.xlu0 %v1347
  %v1349 = vpop.xlane.xlu0 %1348
  %v1350 = vsel %vm293, %v1309, 0.0
  %1351 = vadd.xlane.f32.xlu0 %v1350
  %v1352 = vpop.xlane.xlu0 %1351
  %v1353 = vsel %vm293, %v1311, 0.0
  %1354 = vadd.xlane.f32.xlu0 %v1353
  %v1355 = vpop.xlane.xlu0 %1354
  %v1356 = vsel %vm293, %v1313, 0.0
  %1357 = vadd.xlane.f32.xlu0 %v1356
  %v1358 = vpop.xlane.xlu0 %1357
  %v1359 = vsel %vm293, %v1315, 0.0
  %1360 = vadd.xlane.f32.xlu0 %v1359
  %v1361 = vpop.xlane.xlu0 %1360
  %v1362 = vsel %vm293, %v1317, 0.0
  %1363 = vadd.xlane.f32.xlu0 %v1362
  %v1364 = vpop.xlane.xlu0 %1363
  %v1365 = vsel %vm293, %v1319, 0.0
  %1366 = vadd.xlane.f32.xlu0 %v1365
  %v1367 = vpop.xlane.xlu0 %1366
  %v1368 = vrcp.pop %v1322
  %v1369 = vrcp.pop %v1325
  %v1370 = vrcp.pop %v1328
  %v1371 = vrcp.pop %v1331
  %v1372 = vrcp.pop %v1334
  %v1373 = vrcp.pop %v1337
  %v1374 = vrcp.pop %v1340
  %v1375 = vrcp.pop %v1343
  %v1376 = vrcp.pop %v1346
  %v1377 = vrcp.pop %v1349
  %v1378 = vrcp.pop %v1352
  %v1379 = vrcp.pop %v1355
  %v1380 = vrcp.pop %v1358
  %v1381 = vrcp.pop %v1361
  %v1382 = vrcp.pop %v1364
  %v1383 = vrcp.pop %v1367
  %v1384 = vmul.f32 %v1289, %v1368
  %v1385 = vmul.f32 %v1291, %v1369
  %v1386 = vmul.f32 %v1293, %v1370
  %v1387 = vmul.f32 %v1295, %v1371
  %v1388 = vmul.f32 %v1297, %v1372
  %v1389 = vmul.f32 %v1299, %v1373
  %v1390 = vmul.f32 %v1301, %v1374
  %v1391 = vmul.f32 %v1303, %v1375
  %v1392 = vmul.f32 %v1305, %v1376
  %v1393 = vmul.f32 %v1307, %v1377
  %v1394 = vmul.f32 %v1309, %v1378
  %v1395 = vmul.f32 %v1311, %v1379
  %v1396 = vmul.f32 %v1313, %v1380
  %v1397 = vmul.f32 %v1315, %v1381
  %v1398 = vmul.f32 %v1317, %v1382
  %v1399 = vmul.f32 %v1319, %v1383
  %1400 = vst.msk [vmem:[%s10] sm:$0xff] %vm293, %v1384
  %1401 = vst.msk [vmem:[%s10 + $0x8] sm:$0xff] %vm293, %v1385
  %1402 = vst.msk [vmem:[%s10 + $0x10] sm:$0xff] %vm293, %v1386
  %1403 = vst.msk [vmem:[%s10 + $0x18] sm:$0xff] %vm293, %v1387
  %1404 = vst.msk [vmem:[%s10 + $0x20] sm:$0xff] %vm293, %v1388
  %1405 = vst.msk [vmem:[%s10 + $0x28] sm:$0xff] %vm293, %v1389
  %1406 = vst.msk [vmem:[%s10 + $0x30] sm:$0xff] %vm293, %v1390
  %1407 = vst.msk [vmem:[%s10 + $0x38] sm:$0xff] %vm293, %v1391
  %1408 = vst.msk [vmem:[%s10 + $0x40] sm:$0xff] %vm293, %v1392
  %1409 = vst.msk [vmem:[%s10 + $0x48] sm:$0xff] %vm293, %v1393
  %1410 = vst.msk [vmem:[%s10 + $0x50] sm:$0xff] %vm293, %v1394
  %1411 = vst.msk [vmem:[%s10 + $0x58] sm:$0xff] %vm293, %v1395
  %1412 = vst.msk [vmem:[%s10 + $0x60] sm:$0xff] %vm293, %v1396
  %1413 = vst.msk [vmem:[%s10 + $0x68] sm:$0xff] %vm293, %v1397
  %1414 = vst.msk [vmem:[%s10 + $0x70] sm:$0xff] %vm293, %v1398
  %1415 = vst.msk [vmem:[%s10 + $0x78] sm:$0xff] %vm293, %v1399
  // Predicated region
  $region42: #{tpu_custom_call.1} parent=0 // pred_check
    _
  $region43: #{tpu_custom_call.1} parent=0 // pred_check_branch
    %1417 = sbr.rel (0) target = $region45
  $region44: #{tpu_custom_call.1} parent=0 // pred_region
    _
  $region45: #{tpu_custom_call.1} parent=0 // pred_fallthru
    _
  // Predicated region
  $region46: #{tpu_custom_call.1} parent=0 // pred_check
    _
  $region47: #{tpu_custom_call.1} parent=0 // pred_check_branch
    %1419 = sbr.rel (0) target = $region49
  $region48: #{tpu_custom_call.1} parent=0 // pred_region
    _
  $region49: #{tpu_custom_call.1} parent=0 // pred_fallthru
    _

</llo_original>
